<compile_context>
chip_gen: v6e
topology: v6e:2x2x1
jax: 0.10.0
libtpu: 0.0.40
codegen_flags: <defaults>
</compile_context>

<pallas_src>
import jax
import jax.numpy as jnp
from jax.experimental import pallas as pl
from jax.experimental.pallas import tpu as pltpu


# ----------------------------- Pallas kernel --------------------------------


def fused_bilstm_kernel(xaug_ref, w_in_ref, b_in_ref, whh_ref,
                        w_emb_ref, b_emb_ref, out_ref,
                        gates_s, recf_s, recb_s):
    T, B, nIn2 = xaug_ref.shape
    H2 = whh_ref.shape[0]          # 2*H  (forward | backward state, stacked on lanes)
    H = H2 // 2
    G = w_in_ref.shape[1]          # 8*H  (4 gates x 2 directions)
    nOut = out_ref.shape[-1]

    # ---- Phase 1: hoisted input projection (one GEMM, biases folded in). ----
    xa = xaug_ref[...].reshape(T * B, nIn2)
    ga = (jnp.dot(xa, w_in_ref[...], preferred_element_type=jnp.float32)
          + b_in_ref[...])
    gates_s[...] = ga.reshape(T, B, G)

    whh = whh_ref[...]             # (2H, 8H) block-diag recurrent weights, resident

    # ---- Phase 2: serial recurrence; both directions in one MXU push/step. ----
    def step(t, carry):
        h, c = carry               # (B, 2H) each, layout [fwd | bwd]
        gates = gates_s[t] + jnp.dot(h, whh, preferred_element_type=jnp.float32)
        # Gate layout: [i(2H), f(2H), g(2H), o(2H)], each 2H = [fwd(H), bwd(H)].
        i = jax.nn.sigmoid(gates[:, 0 * H2:1 * H2])
        f = jax.nn.sigmoid(gates[:, 1 * H2:2 * H2])
        g = jnp.tanh(gates[:, 2 * H2:3 * H2])
        o = jax.nn.sigmoid(gates[:, 3 * H2:4 * H2])
        c = f * c + i * g
        h = o * jnp.tanh(c)
        # Forward half belongs to output time t; backward half (which just
        # consumed x[T-1-t]) belongs to output time T-1-t.
        recf_s[t] = h[:, :H]
        recb_s[T - 1 - t] = h[:, H:]
        return (h, c)

    h0 = jnp.zeros((B, H2), jnp.float32)
    c0 = jnp.zeros((B, H2), jnp.float32)
    jax.lax.fori_loop(0, T, step, (h0, c0), unroll=True)

    # ---- Phase 3: fused embedding Linear over the full (T*B, 2H) slab. ----
    rec = jnp.concatenate([recf_s[...], recb_s[...]], axis=-1)   # (T, B, 2H)
    t_rec = rec.reshape(T * B, H2)
    out = (jnp.dot(t_rec, w_emb_ref[...], preferred_element_type=jnp.float32)
           + b_emb_ref[...])
    out_ref[...] = out.reshape(T, B, nOut)


# ------------------------- Host-side weight packing --------------------------


def _interleave_gate_cols(wf, wb, H):
    # PyTorch per-direction gate order is [i, f, g, o]; produce the combined column
    # layout [i_f, i_b, f_f, f_b, g_f, g_b, o_f, o_b] so each gate is a contiguous
    # 2H-wide slice aligned with the [h_f, h_b] state layout in the kernel.
    cols = []
    for gidx in range(4):
        cols.append(wf[:, gidx * H:(gidx + 1) * H])
        cols.append(wb[:, gidx * H:(gidx + 1) * H])
    return jnp.concatenate(cols, axis=1)


def _pack_params(params, H):
    zf_in = jnp.zeros_like(params["wih_f"])
    zb_in = jnp.zeros_like(params["wih_b"])
    # (2*nIn, 8H): rows 0:nIn act on x[t] -> forward gate columns,
    #              rows nIn:2nIn act on x[T-1-t] -> backward gate columns.
    w_aug = jnp.concatenate(
        [_interleave_gate_cols(params["wih_f"], zb_in, H),
         _interleave_gate_cols(zf_in, params["wih_b"], H)], axis=0)
    b_in = _interleave_gate_cols(params["b_f"], params["b_b"], H)        # (1, 8H)

    zf_h = jnp.zeros_like(params["whh_f"])
    zb_h = jnp.zeros_like(params["whh_b"])
    # (2H, 8H) block-diagonal: h_f rows feed forward gates, h_b rows feed backward.
    whh_blk = jnp.concatenate(
        [_interleave_gate_cols(params["whh_f"], zb_h, H),
         _interleave_gate_cols(zf_h, params["whh_b"], H)], axis=0)
    return w_aug, b_in, whh_blk


# --------------------------------- Wrapper -----------------------------------


def bidir_lstm_pallas(x, params):
    """x: (T, B, nIn) f32 -> (T, B, nOut) f32."""
    T, B, nIn = x.shape
    H = params["whh_f"].shape[0]
    nOut = params["w_emb"].shape[1]
    H2, G = 2 * H, 8 * H

    w_aug, b_in, whh_blk = _pack_params(params, H)
    # Bake the backward direction's time reversal into the input so the kernel's
    # per-step input-gate row is a single contiguous read.
    x_aug = jnp.concatenate([x, x[::-1]], axis=-1)                # (T, B, 2*nIn)

    kernel = pl.pallas_call(
        fused_bilstm_kernel,
        out_shape=jax.ShapeDtypeStruct((T, B, nOut), jnp.float32),
        grid_spec=pltpu.PrefetchScalarGridSpec(
            num_scalar_prefetch=0,
            grid=(1,),
            in_specs=[
                pl.BlockSpec((T, B, 2 * nIn), lambda i: (0, 0, 0)),   # x_aug
                pl.BlockSpec((2 * nIn, G), lambda i: (0, 0)),          # W_in (aug)
                pl.BlockSpec((1, G), lambda i: (0, 0)),                # b_in
                pl.BlockSpec((H2, G), lambda i: (0, 0)),               # Whh (block-diag)
                pl.BlockSpec((H2, nOut), lambda i: (0, 0)),            # W_emb
                pl.BlockSpec((1, nOut), lambda i: (0, 0)),             # b_emb
            ],
            out_specs=pl.BlockSpec((T, B, nOut), lambda i: (0, 0, 0)),
            scratch_shapes=[
                pltpu.VMEM((T, B, G), jnp.float32),   # precomputed input gates
                pltpu.VMEM((T, B, H), jnp.float32),   # forward hidden stream
                pltpu.VMEM((T, B, H), jnp.float32),   # backward hidden stream
            ],
        ),
        compiler_params=pltpu.CompilerParams(
            dimension_semantics=("arbitrary",)),
    )
    return kernel(x_aug, w_aug, b_in, whh_blk,
                  params["w_emb"], params["b_emb"])


# ------------------------- Pure-JAX reference ---------------------------------


def _lstm_dir_ref(x, wih, whh, b, H):
    B = x.shape[1]

    def step(carry, xt):
        h, c = carry
        gates = xt @ wih + h @ whh + b[0]
        i = jax.nn.sigmoid(gates[:, 0 * H:1 * H])
        f = jax.nn.sigmoid(gates[:, 1 * H:2 * H])
        g = jnp.tanh(gates[:, 2 * H:3 * H])
        o = jax.nn.sigmoid(gates[:, 3 * H:4 * H])
        c = f * c + i * g
        h = o * jnp.tanh(c)
        return (h, c), h

    init = (jnp.zeros((B, H), jnp.float32), jnp.zeros((B, H), jnp.float32))
    _, hs = jax.lax.scan(step, init, x)
    return hs


def bidir_lstm_ref(x, params):
    H = params["whh_f"].shape[0]
    hf = _lstm_dir_ref(x, params["wih_f"], params["whh_f"], params["b_f"], H)
    hb = _lstm_dir_ref(x[::-1], params["wih_b"], params["whh_b"],
                       params["b_b"], H)[::-1]
    rec = jnp.concatenate([hf, hb], axis=-1)
    T, B, _ = rec.shape
    out = rec.reshape(T * B, 2 * H) @ params["w_emb"] + params["b_emb"][0]
    return out.reshape(T, B, -1)


# --------------------------------- Params -------------------------------------


def init_params(key, nIn, H, nOut):
    k = 1.0 / jnp.sqrt(H)
    ks = jax.random.split(key, 10)
    u = lambda kk, shape: jax.random.uniform(kk, shape, jnp.float32, -k, k)
    return {
        # forward direction (weights stored transposed: (in, 4H), gate order i,f,g,o)
        "wih_f": u(ks[0], (nIn, 4 * H)),
        "whh_f": u(ks[1], (H, 4 * H)),
        "b_f": u(ks[2], (1, 4 * H)) + u(ks[3], (1, 4 * H)),   # b_ih + b_hh
        # reverse direction
        "wih_b": u(ks[4], (nIn, 4 * H)),
        "whh_b": u(ks[5], (H, 4 * H)),
        "b_b": u(ks[6], (1, 4 * H)) + u(ks[7], (1, 4 * H)),
        # embedding Linear(2H -> nOut), stored transposed: (2H, nOut)
        "w_emb": u(ks[8], (2 * H, nOut)),
        "b_emb": u(ks[9], (1, nOut)),
    }


# ---------------------------------- Main --------------------------------------


if __name__ == "__main__":
    T, B, nIn, H, nOut = 8, 2, 16, 32, 16

    key = jax.random.PRNGKey(0)
    kx, kp = jax.random.split(key)
    x = jax.random.normal(kx, (T, B, nIn), jnp.float32)
    params = init_params(kp, nIn, H, nOut)

    out = jax.block_until_ready(bidir_lstm_pallas(x, params))
    ref = jax.block_until_ready(bidir_lstm_ref(x, params))

    assert out.shape == (T, B, nOut), out.shape
    assert jnp.allclose(out, ref, rtol=5e-3, atol=5e-3), (
        float(jnp.max(jnp.abs(out - ref))))

    print("KERNEL_OK")
</pallas_src>

<mosaic_0001>
module attributes {stable_mosaic.version = 11 : i64} {
  func.func @fused_bilstm_kernel(%arg0: i32, %arg1: memref<8x2x32xf32, #tpu.memory_space<vmem>>, %arg2: memref<32x256xf32, #tpu.memory_space<vmem>>, %arg3: memref<1x256xf32, #tpu.memory_space<vmem>>, %arg4: memref<64x256xf32, #tpu.memory_space<vmem>>, %arg5: memref<64x16xf32, #tpu.memory_space<vmem>>, %arg6: memref<1x16xf32, #tpu.memory_space<vmem>>, %arg7: memref<8x2x16xf32, #tpu.memory_space<vmem>>, %arg8: memref<8x2x256xf32, #tpu.memory_space<vmem>>, %arg9: memref<8x2x32xf32, #tpu.memory_space<vmem>>, %arg10: memref<8x2x32xf32, #tpu.memory_space<vmem>>) attributes {dimension_semantics = [#tpu.dimension_semantics<arbitrary>], iteration_bounds = array<i64: 1>, scalar_prefetch = 0 : i64, scratch_operands = 3 : i64, tpu.core_type = #tpu.core_type<tc>, window_params = [{pipeline_mode = #tpu.pipeline_mode<synchronous>, transform_indices = @transform_0, window_bounds = array<i64: 8, 2, 32>}, {pipeline_mode = #tpu.pipeline_mode<synchronous>, transform_indices = @transform_1, window_bounds = array<i64: 32, 256>}, {pipeline_mode = #tpu.pipeline_mode<synchronous>, transform_indices = @transform_2, window_bounds = array<i64: 1, 256>}, {pipeline_mode = #tpu.pipeline_mode<synchronous>, transform_indices = @transform_3, window_bounds = array<i64: 64, 256>}, {pipeline_mode = #tpu.pipeline_mode<synchronous>, transform_indices = @transform_4, window_bounds = array<i64: 64, 16>}, {pipeline_mode = #tpu.pipeline_mode<synchronous>, transform_indices = @transform_5, window_bounds = array<i64: 1, 16>}, {pipeline_mode = #tpu.pipeline_mode<synchronous>, transform_indices = @transform_6, window_bounds = array<i64: 8, 2, 16>}]} {
    %c0 = arith.constant 0 : index
    %c0_0 = arith.constant 0 : index
    %c0_1 = arith.constant 0 : index
    %0 = vector.load %arg1[%c0, %c0_0, %c0_1] : memref<8x2x32xf32, #tpu.memory_space<vmem>>, vector<8x2x32xf32>
    %1 = vector.shape_cast %0 : vector<8x2x32xf32> to vector<16x32xf32>
    %c0_2 = arith.constant 0 : index
    %c0_3 = arith.constant 0 : index
    %2 = vector.load %arg2[%c0_2, %c0_3] : memref<32x256xf32, #tpu.memory_space<vmem>>, vector<32x256xf32>
    %cst = arith.constant dense<0.000000e+00> : vector<16x256xf32>
    %3 = tpu.matmul %1, %2, %cst {dimension_numbers = #tpu.dot_dimension_numbers<[1], [0], [0], [1], [0, 0, 1, 1], [], []>} : vector<16x32xf32>, vector<32x256xf32>, vector<16x256xf32> -> vector<16x256xf32>
    %c0_4 = arith.constant 0 : index
    %c0_5 = arith.constant 0 : index
    %4 = vector.load %arg3[%c0_4, %c0_5] : memref<1x256xf32, #tpu.memory_space<vmem>>, vector<1x256xf32>
    %5 = vector.broadcast %4 : vector<1x256xf32> to vector<16x256xf32>
    %6 = arith.addf %3, %5 : vector<16x256xf32>
    %7 = vector.shape_cast %6 : vector<16x256xf32> to vector<8x2x256xf32>
    %c0_6 = arith.constant 0 : index
    %c0_7 = arith.constant 0 : index
    %c0_8 = arith.constant 0 : index
    %8 = vector.load %arg8[%c0_6, %c0_7, %c0_8] : memref<8x2x256xf32, #tpu.memory_space<vmem>>, vector<8x2x256xf32>
    tpu.vector_store %arg8[%c0_6, %c0_7, %c0_8], %7 {strides = array<i32>} : memref<8x2x256xf32, #tpu.memory_space<vmem>>, vector<8x2x256xf32>,
    %c0_9 = arith.constant 0 : index
    %c0_10 = arith.constant 0 : index
    %9 = vector.load %arg4[%c0_9, %c0_10] : memref<64x256xf32, #tpu.memory_space<vmem>>, vector<64x256xf32>
    %cst_11 = arith.constant 0.000000e+00 : f32
    %10 = vector.broadcast %cst_11 : f32 to vector<2x64xf32>
    %cst_12 = arith.constant 0.000000e+00 : f32
    %11 = vector.broadcast %cst_12 : f32 to vector<2x64xf32>
    %c0_i32 = arith.constant 0 : i32
    %12 = arith.index_cast %c0_i32 : i32 to index
    %c0_13 = arith.constant 0 : index
    %c0_14 = arith.constant 0 : index
    %13 = vector.load %arg8[%12, %c0_13, %c0_14] : memref<8x2x256xf32, #tpu.memory_space<vmem>>, vector<1x2x256xf32>
    %14 = vector.shape_cast %13 : vector<1x2x256xf32> to vector<2x256xf32>
    %cst_15 = arith.constant dense<0.000000e+00> : vector<2x256xf32>
    %15 = tpu.matmul %10, %9, %cst_15 {dimension_numbers = #tpu.dot_dimension_numbers<[1], [0], [0], [1], [0, 0, 1, 1], [], []>} : vector<2x64xf32>, vector<64x256xf32>, vector<2x256xf32> -> vector<2x256xf32>
    %16 = arith.addf %14, %15 : vector<2x256xf32>
    %17 = vector.extract_strided_slice %16 {offsets = [0, 0], sizes = [2, 64], strides = [1, 1]} : vector<2x256xf32> to vector<2x64xf32>
    %18 = arith.negf %17 : vector<2x64xf32>
    %19 = math.exp %18 : vector<2x64xf32>
    %cst_16 = arith.constant 1.000000e+00 : f32
    %20 = vector.broadcast %cst_16 : f32 to vector<2x64xf32>
    %21 = arith.addf %20, %19 : vector<2x64xf32>
    %22 = arith.divf %20, %21 : vector<2x64xf32>
    %23 = vector.extract_strided_slice %16 {offsets = [0, 64], sizes = [2, 64], strides = [1, 1]} : vector<2x256xf32> to vector<2x64xf32>
    %24 = arith.negf %23 : vector<2x64xf32>
    %25 = math.exp %24 : vector<2x64xf32>
    %cst_17 = arith.constant 1.000000e+00 : f32
    %26 = vector.broadcast %cst_17 : f32 to vector<2x64xf32>
    %27 = arith.addf %26, %25 : vector<2x64xf32>
    %28 = arith.divf %26, %27 : vector<2x64xf32>
    %29 = vector.extract_strided_slice %16 {offsets = [0, 128], sizes = [2, 64], strides = [1, 1]} : vector<2x256xf32> to vector<2x64xf32>
    %30 = math.tanh %29 : vector<2x64xf32>
    %31 = vector.extract_strided_slice %16 {offsets = [0, 192], sizes = [2, 64], strides = [1, 1]} : vector<2x256xf32> to vector<2x64xf32>
    %32 = arith.negf %31 : vector<2x64xf32>
    %33 = math.exp %32 : vector<2x64xf32>
    %cst_18 = arith.constant 1.000000e+00 : f32
    %34 = vector.broadcast %cst_18 : f32 to vector<2x64xf32>
    %35 = arith.addf %34, %33 : vector<2x64xf32>
    %36 = arith.divf %34, %35 : vector<2x64xf32>
    %37 = arith.mulf %28, %11 : vector<2x64xf32>
    %38 = arith.mulf %22, %30 : vector<2x64xf32>
    %39 = arith.addf %37, %38 : vector<2x64xf32>
    %40 = math.tanh %39 : vector<2x64xf32>
    %41 = arith.mulf %36, %40 : vector<2x64xf32>
    %42 = vector.extract_strided_slice %41 {offsets = [0, 0], sizes = [2, 32], strides = [1, 1]} : vector<2x64xf32> to vector<2x32xf32>
    %43 = arith.index_cast %c0_i32 : i32 to index
    %c0_19 = arith.constant 0 : index
    %c0_20 = arith.constant 0 : index
    %44 = vector.load %arg9[%43, %c0_19, %c0_20] : memref<8x2x32xf32, #tpu.memory_space<vmem>>, vector<1x2x32xf32>
    %45 = vector.shape_cast %44 : vector<1x2x32xf32> to vector<2x32xf32>
    %46 = vector.shape_cast %42 : vector<2x32xf32> to vector<1x2x32xf32>
    tpu.vector_store %arg9[%43, %c0_19, %c0_20], %46 {strides = array<i32>} : memref<8x2x32xf32, #tpu.memory_space<vmem>>, vector<1x2x32xf32>,
    %47 = vector.extract_strided_slice %41 {offsets = [0, 32], sizes = [2, 32], strides = [1, 1]} : vector<2x64xf32> to vector<2x32xf32>
    %c7_i32 = arith.constant 7 : i32
    %48 = arith.subi %c7_i32, %c0_i32 : i32
    %49 = arith.index_cast %48 : i32 to index
    %c0_21 = arith.constant 0 : index
    %c0_22 = arith.constant 0 : index
    %50 = vector.load %arg10[%49, %c0_21, %c0_22] : memref<8x2x32xf32, #tpu.memory_space<vmem>>, vector<1x2x32xf32>
    %51 = vector.shape_cast %50 : vector<1x2x32xf32> to vector<2x32xf32>
    %52 = vector.shape_cast %47 : vector<2x32xf32> to vector<1x2x32xf32>
    tpu.vector_store %arg10[%49, %c0_21, %c0_22], %52 {strides = array<i32>} : memref<8x2x32xf32, #tpu.memory_space<vmem>>, vector<1x2x32xf32>,
    %c1_i32 = arith.constant 1 : i32
    %53 = arith.index_cast %c1_i32 : i32 to index
    %c0_23 = arith.constant 0 : index
    %c0_24 = arith.constant 0 : index
    %54 = vector.load %arg8[%53, %c0_23, %c0_24] : memref<8x2x256xf32, #tpu.memory_space<vmem>>, vector<1x2x256xf32>
    %55 = vector.shape_cast %54 : vector<1x2x256xf32> to vector<2x256xf32>
    %cst_25 = arith.constant dense<0.000000e+00> : vector<2x256xf32>
    %56 = tpu.matmul %41, %9, %cst_25 {dimension_numbers = #tpu.dot_dimension_numbers<[1], [0], [0], [1], [0, 0, 1, 1], [], []>} : vector<2x64xf32>, vector<64x256xf32>, vector<2x256xf32> -> vector<2x256xf32>
    %57 = arith.addf %55, %56 : vector<2x256xf32>
    %58 = vector.extract_strided_slice %57 {offsets = [0, 0], sizes = [2, 64], strides = [1, 1]} : vector<2x256xf32> to vector<2x64xf32>
    %59 = arith.negf %58 : vector<2x64xf32>
    %60 = math.exp %59 : vector<2x64xf32>
    %cst_26 = arith.constant 1.000000e+00 : f32
    %61 = vector.broadcast %cst_26 : f32 to vector<2x64xf32>
    %62 = arith.addf %61, %60 : vector<2x64xf32>
    %63 = arith.divf %61, %62 : vector<2x64xf32>
    %64 = vector.extract_strided_slice %57 {offsets = [0, 64], sizes = [2, 64], strides = [1, 1]} : vector<2x256xf32> to vector<2x64xf32>
    %65 = arith.negf %64 : vector<2x64xf32>
    %66 = math.exp %65 : vector<2x64xf32>
    %cst_27 = arith.constant 1.000000e+00 : f32
    %67 = vector.broadcast %cst_27 : f32 to vector<2x64xf32>
    %68 = arith.addf %67, %66 : vector<2x64xf32>
    %69 = arith.divf %67, %68 : vector<2x64xf32>
    %70 = vector.extract_strided_slice %57 {offsets = [0, 128], sizes = [2, 64], strides = [1, 1]} : vector<2x256xf32> to vector<2x64xf32>
    %71 = math.tanh %70 : vector<2x64xf32>
    %72 = vector.extract_strided_slice %57 {offsets = [0, 192], sizes = [2, 64], strides = [1, 1]} : vector<2x256xf32> to vector<2x64xf32>
    %73 = arith.negf %72 : vector<2x64xf32>
    %74 = math.exp %73 : vector<2x64xf32>
    %cst_28 = arith.constant 1.000000e+00 : f32
    %75 = vector.broadcast %cst_28 : f32 to vector<2x64xf32>
    %76 = arith.addf %75, %74 : vector<2x64xf32>
    %77 = arith.divf %75, %76 : vector<2x64xf32>
    %78 = arith.mulf %69, %39 : vector<2x64xf32>
    %79 = arith.mulf %63, %71 : vector<2x64xf32>
    %80 = arith.addf %78, %79 : vector<2x64xf32>
    %81 = math.tanh %80 : vector<2x64xf32>
    %82 = arith.mulf %77, %81 : vector<2x64xf32>
    %83 = vector.extract_strided_slice %82 {offsets = [0, 0], sizes = [2, 32], strides = [1, 1]} : vector<2x64xf32> to vector<2x32xf32>
    %84 = arith.index_cast %c1_i32 : i32 to index
    %c0_29 = arith.constant 0 : index
    %c0_30 = arith.constant 0 : index
    %85 = vector.load %arg9[%84, %c0_29, %c0_30] : memref<8x2x32xf32, #tpu.memory_space<vmem>>, vector<1x2x32xf32>
    %86 = vector.shape_cast %85 : vector<1x2x32xf32> to vector<2x32xf32>
    %87 = vector.shape_cast %83 : vector<2x32xf32> to vector<1x2x32xf32>
    tpu.vector_store %arg9[%84, %c0_29, %c0_30], %87 {strides = array<i32>} : memref<8x2x32xf32, #tpu.memory_space<vmem>>, vector<1x2x32xf32>,
    %88 = vector.extract_strided_slice %82 {offsets = [0, 32], sizes = [2, 32], strides = [1, 1]} : vector<2x64xf32> to vector<2x32xf32>
    %c7_i32_31 = arith.constant 7 : i32
    %89 = arith.subi %c7_i32_31, %c1_i32 : i32
    %90 = arith.index_cast %89 : i32 to index
    %c0_32 = arith.constant 0 : index
    %c0_33 = arith.constant 0 : index
    %91 = vector.load %arg10[%90, %c0_32, %c0_33] : memref<8x2x32xf32, #tpu.memory_space<vmem>>, vector<1x2x32xf32>
    %92 = vector.shape_cast %91 : vector<1x2x32xf32> to vector<2x32xf32>
    %93 = vector.shape_cast %88 : vector<2x32xf32> to vector<1x2x32xf32>
    tpu.vector_store %arg10[%90, %c0_32, %c0_33], %93 {strides = array<i32>} : memref<8x2x32xf32, #tpu.memory_space<vmem>>, vector<1x2x32xf32>,
    %c2_i32 = arith.constant 2 : i32
    %94 = arith.index_cast %c2_i32 : i32 to index
    %c0_34 = arith.constant 0 : index
    %c0_35 = arith.constant 0 : index
    %95 = vector.load %arg8[%94, %c0_34, %c0_35] : memref<8x2x256xf32, #tpu.memory_space<vmem>>, vector<1x2x256xf32>
    %96 = vector.shape_cast %95 : vector<1x2x256xf32> to vector<2x256xf32>
    %cst_36 = arith.constant dense<0.000000e+00> : vector<2x256xf32>
    %97 = tpu.matmul %82, %9, %cst_36 {dimension_numbers = #tpu.dot_dimension_numbers<[1], [0], [0], [1], [0, 0, 1, 1], [], []>} : vector<2x64xf32>, vector<64x256xf32>, vector<2x256xf32> -> vector<2x256xf32>
    %98 = arith.addf %96, %97 : vector<2x256xf32>
    %99 = vector.extract_strided_slice %98 {offsets = [0, 0], sizes = [2, 64], strides = [1, 1]} : vector<2x256xf32> to vector<2x64xf32>
    %100 = arith.negf %99 : vector<2x64xf32>
    %101 = math.exp %100 : vector<2x64xf32>
    %cst_37 = arith.constant 1.000000e+00 : f32
    %102 = vector.broadcast %cst_37 : f32 to vector<2x64xf32>
    %103 = arith.addf %102, %101 : vector<2x64xf32>
    %104 = arith.divf %102, %103 : vector<2x64xf32>
    %105 = vector.extract_strided_slice %98 {offsets = [0, 64], sizes = [2, 64], strides = [1, 1]} : vector<2x256xf32> to vector<2x64xf32>
    %106 = arith.negf %105 : vector<2x64xf32>
    %107 = math.exp %106 : vector<2x64xf32>
    %cst_38 = arith.constant 1.000000e+00 : f32
    %108 = vector.broadcast %cst_38 : f32 to vector<2x64xf32>
    %109 = arith.addf %108, %107 : vector<2x64xf32>
    %110 = arith.divf %108, %109 : vector<2x64xf32>
    %111 = vector.extract_strided_slice %98 {offsets = [0, 128], sizes = [2, 64], strides = [1, 1]} : vector<2x256xf32> to vector<2x64xf32>
    %112 = math.tanh %111 : vector<2x64xf32>
    %113 = vector.extract_strided_slice %98 {offsets = [0, 192], sizes = [2, 64], strides = [1, 1]} : vector<2x256xf32> to vector<2x64xf32>
    %114 = arith.negf %113 : vector<2x64xf32>
    %115 = math.exp %114 : vector<2x64xf32>
    %cst_39 = arith.constant 1.000000e+00 : f32
    %116 = vector.broadcast %cst_39 : f32 to vector<2x64xf32>
    %117 = arith.addf %116, %115 : vector<2x64xf32>
    %118 = arith.divf %116, %117 : vector<2x64xf32>
    %119 = arith.mulf %110, %80 : vector<2x64xf32>
    %120 = arith.mulf %104, %112 : vector<2x64xf32>
    %121 = arith.addf %119, %120 : vector<2x64xf32>
    %122 = math.tanh %121 : vector<2x64xf32>
    %123 = arith.mulf %118, %122 : vector<2x64xf32>
    %124 = vector.extract_strided_slice %123 {offsets = [0, 0], sizes = [2, 32], strides = [1, 1]} : vector<2x64xf32> to vector<2x32xf32>
    %125 = arith.index_cast %c2_i32 : i32 to index
    %c0_40 = arith.constant 0 : index
    %c0_41 = arith.constant 0 : index
    %126 = vector.load %arg9[%125, %c0_40, %c0_41] : memref<8x2x32xf32, #tpu.memory_space<vmem>>, vector<1x2x32xf32>
    %127 = vector.shape_cast %126 : vector<1x2x32xf32> to vector<2x32xf32>
    %128 = vector.shape_cast %124 : vector<2x32xf32> to vector<1x2x32xf32>
    tpu.vector_store %arg9[%125, %c0_40, %c0_41], %128 {strides = array<i32>} : memref<8x2x32xf32, #tpu.memory_space<vmem>>, vector<1x2x32xf32>,
    %129 = vector.extract_strided_slice %123 {offsets = [0, 32], sizes = [2, 32], strides = [1, 1]} : vector<2x64xf32> to vector<2x32xf32>
    %c7_i32_42 = arith.constant 7 : i32
    %130 = arith.subi %c7_i32_42, %c2_i32 : i32
    %131 = arith.index_cast %130 : i32 to index
    %c0_43 = arith.constant 0 : index
    %c0_44 = arith.constant 0 : index
    %132 = vector.load %arg10[%131, %c0_43, %c0_44] : memref<8x2x32xf32, #tpu.memory_space<vmem>>, vector<1x2x32xf32>
    %133 = vector.shape_cast %132 : vector<1x2x32xf32> to vector<2x32xf32>
    %134 = vector.shape_cast %129 : vector<2x32xf32> to vector<1x2x32xf32>
    tpu.vector_store %arg10[%131, %c0_43, %c0_44], %134 {strides = array<i32>} : memref<8x2x32xf32, #tpu.memory_space<vmem>>, vector<1x2x32xf32>,
    %c3_i32 = arith.constant 3 : i32
    %135 = arith.index_cast %c3_i32 : i32 to index
    %c0_45 = arith.constant 0 : index
    %c0_46 = arith.constant 0 : index
    %136 = vector.load %arg8[%135, %c0_45, %c0_46] : memref<8x2x256xf32, #tpu.memory_space<vmem>>, vector<1x2x256xf32>
    %137 = vector.shape_cast %136 : vector<1x2x256xf32> to vector<2x256xf32>
    %cst_47 = arith.constant dense<0.000000e+00> : vector<2x256xf32>
    %138 = tpu.matmul %123, %9, %cst_47 {dimension_numbers = #tpu.dot_dimension_numbers<[1], [0], [0], [1], [0, 0, 1, 1], [], []>} : vector<2x64xf32>, vector<64x256xf32>, vector<2x256xf32> -> vector<2x256xf32>
    %139 = arith.addf %137, %138 : vector<2x256xf32>
    %140 = vector.extract_strided_slice %139 {offsets = [0, 0], sizes = [2, 64], strides = [1, 1]} : vector<2x256xf32> to vector<2x64xf32>
    %141 = arith.negf %140 : vector<2x64xf32>
    %142 = math.exp %141 : vector<2x64xf32>
    %cst_48 = arith.constant 1.000000e+00 : f32
    %143 = vector.broadcast %cst_48 : f32 to vector<2x64xf32>
    %144 = arith.addf %143, %142 : vector<2x64xf32>
    %145 = arith.divf %143, %144 : vector<2x64xf32>
    %146 = vector.extract_strided_slice %139 {offsets = [0, 64], sizes = [2, 64], strides = [1, 1]} : vector<2x256xf32> to vector<2x64xf32>
    %147 = arith.negf %146 : vector<2x64xf32>
    %148 = math.exp %147 : vector<2x64xf32>
    %cst_49 = arith.constant 1.000000e+00 : f32
    %149 = vector.broadcast %cst_49 : f32 to vector<2x64xf32>
    %150 = arith.addf %149, %148 : vector<2x64xf32>
    %151 = arith.divf %149, %150 : vector<2x64xf32>
    %152 = vector.extract_strided_slice %139 {offsets = [0, 128], sizes = [2, 64], strides = [1, 1]} : vector<2x256xf32> to vector<2x64xf32>
    %153 = math.tanh %152 : vector<2x64xf32>
    %154 = vector.extract_strided_slice %139 {offsets = [0, 192], sizes = [2, 64], strides = [1, 1]} : vector<2x256xf32> to vector<2x64xf32>
    %155 = arith.negf %154 : vector<2x64xf32>
    %156 = math.exp %155 : vector<2x64xf32>
    %cst_50 = arith.constant 1.000000e+00 : f32
    %157 = vector.broadcast %cst_50 : f32 to vector<2x64xf32>
    %158 = arith.addf %157, %156 : vector<2x64xf32>
    %159 = arith.divf %157, %158 : vector<2x64xf32>
    %160 = arith.mulf %151, %121 : vector<2x64xf32>
    %161 = arith.mulf %145, %153 : vector<2x64xf32>
    %162 = arith.addf %160, %161 : vector<2x64xf32>
    %163 = math.tanh %162 : vector<2x64xf32>
    %164 = arith.mulf %159, %163 : vector<2x64xf32>
    %165 = vector.extract_strided_slice %164 {offsets = [0, 0], sizes = [2, 32], strides = [1, 1]} : vector<2x64xf32> to vector<2x32xf32>
    %166 = arith.index_cast %c3_i32 : i32 to index
    %c0_51 = arith.constant 0 : index
    %c0_52 = arith.constant 0 : index
    %167 = vector.load %arg9[%166, %c0_51, %c0_52] : memref<8x2x32xf32, #tpu.memory_space<vmem>>, vector<1x2x32xf32>
    %168 = vector.shape_cast %167 : vector<1x2x32xf32> to vector<2x32xf32>
    %169 = vector.shape_cast %165 : vector<2x32xf32> to vector<1x2x32xf32>
    tpu.vector_store %arg9[%166, %c0_51, %c0_52], %169 {strides = array<i32>} : memref<8x2x32xf32, #tpu.memory_space<vmem>>, vector<1x2x32xf32>,
    %170 = vector.extract_strided_slice %164 {offsets = [0, 32], sizes = [2, 32], strides = [1, 1]} : vector<2x64xf32> to vector<2x32xf32>
    %c7_i32_53 = arith.constant 7 : i32
    %171 = arith.subi %c7_i32_53, %c3_i32 : i32
    %172 = arith.index_cast %171 : i32 to index
    %c0_54 = arith.constant 0 : index
    %c0_55 = arith.constant 0 : index
    %173 = vector.load %arg10[%172, %c0_54, %c0_55] : memref<8x2x32xf32, #tpu.memory_space<vmem>>, vector<1x2x32xf32>
    %174 = vector.shape_cast %173 : vector<1x2x32xf32> to vector<2x32xf32>
    %175 = vector.shape_cast %170 : vector<2x32xf32> to vector<1x2x32xf32>
    tpu.vector_store %arg10[%172, %c0_54, %c0_55], %175 {strides = array<i32>} : memref<8x2x32xf32, #tpu.memory_space<vmem>>, vector<1x2x32xf32>,
    %c4_i32 = arith.constant 4 : i32
    %176 = arith.index_cast %c4_i32 : i32 to index
    %c0_56 = arith.constant 0 : index
    %c0_57 = arith.constant 0 : index
    %177 = vector.load %arg8[%176, %c0_56, %c0_57] : memref<8x2x256xf32, #tpu.memory_space<vmem>>, vector<1x2x256xf32>
    %178 = vector.shape_cast %177 : vector<1x2x256xf32> to vector<2x256xf32>
    %cst_58 = arith.constant dense<0.000000e+00> : vector<2x256xf32>
    %179 = tpu.matmul %164, %9, %cst_58 {dimension_numbers = #tpu.dot_dimension_numbers<[1], [0], [0], [1], [0, 0, 1, 1], [], []>} : vector<2x64xf32>, vector<64x256xf32>, vector<2x256xf32> -> vector<2x256xf32>
    %180 = arith.addf %178, %179 : vector<2x256xf32>
    %181 = vector.extract_strided_slice %180 {offsets = [0, 0], sizes = [2, 64], strides = [1, 1]} : vector<2x256xf32> to vector<2x64xf32>
    %182 = arith.negf %181 : vector<2x64xf32>
    %183 = math.exp %182 : vector<2x64xf32>
    %cst_59 = arith.constant 1.000000e+00 : f32
    %184 = vector.broadcast %cst_59 : f32 to vector<2x64xf32>
    %185 = arith.addf %184, %183 : vector<2x64xf32>
    %186 = arith.divf %184, %185 : vector<2x64xf32>
    %187 = vector.extract_strided_slice %180 {offsets = [0, 64], sizes = [2, 64], strides = [1, 1]} : vector<2x256xf32> to vector<2x64xf32>
    %188 = arith.negf %187 : vector<2x64xf32>
    %189 = math.exp %188 : vector<2x64xf32>
    %cst_60 = arith.constant 1.000000e+00 : f32
    %190 = vector.broadcast %cst_60 : f32 to vector<2x64xf32>
    %191 = arith.addf %190, %189 : vector<2x64xf32>
    %192 = arith.divf %190, %191 : vector<2x64xf32>
    %193 = vector.extract_strided_slice %180 {offsets = [0, 128], sizes = [2, 64], strides = [1, 1]} : vector<2x256xf32> to vector<2x64xf32>
    %194 = math.tanh %193 : vector<2x64xf32>
    %195 = vector.extract_strided_slice %180 {offsets = [0, 192], sizes = [2, 64], strides = [1, 1]} : vector<2x256xf32> to vector<2x64xf32>
    %196 = arith.negf %195 : vector<2x64xf32>
    %197 = math.exp %196 : vector<2x64xf32>
    %cst_61 = arith.constant 1.000000e+00 : f32
    %198 = vector.broadcast %cst_61 : f32 to vector<2x64xf32>
    %199 = arith.addf %198, %197 : vector<2x64xf32>
    %200 = arith.divf %198, %199 : vector<2x64xf32>
    %201 = arith.mulf %192, %162 : vector<2x64xf32>
    %202 = arith.mulf %186, %194 : vector<2x64xf32>
    %203 = arith.addf %201, %202 : vector<2x64xf32>
    %204 = math.tanh %203 : vector<2x64xf32>
    %205 = arith.mulf %200, %204 : vector<2x64xf32>
    %206 = vector.extract_strided_slice %205 {offsets = [0, 0], sizes = [2, 32], strides = [1, 1]} : vector<2x64xf32> to vector<2x32xf32>
    %207 = arith.index_cast %c4_i32 : i32 to index
    %c0_62 = arith.constant 0 : index
    %c0_63 = arith.constant 0 : index
    %208 = vector.load %arg9[%207, %c0_62, %c0_63] : memref<8x2x32xf32, #tpu.memory_space<vmem>>, vector<1x2x32xf32>
    %209 = vector.shape_cast %208 : vector<1x2x32xf32> to vector<2x32xf32>
    %210 = vector.shape_cast %206 : vector<2x32xf32> to vector<1x2x32xf32>
    tpu.vector_store %arg9[%207, %c0_62, %c0_63], %210 {strides = array<i32>} : memref<8x2x32xf32, #tpu.memory_space<vmem>>, vector<1x2x32xf32>,
    %211 = vector.extract_strided_slice %205 {offsets = [0, 32], sizes = [2, 32], strides = [1, 1]} : vector<2x64xf32> to vector<2x32xf32>
    %c7_i32_64 = arith.constant 7 : i32
    %212 = arith.subi %c7_i32_64, %c4_i32 : i32
    %213 = arith.index_cast %212 : i32 to index
    %c0_65 = arith.constant 0 : index
    %c0_66 = arith.constant 0 : index
    %214 = vector.load %arg10[%213, %c0_65, %c0_66] : memref<8x2x32xf32, #tpu.memory_space<vmem>>, vector<1x2x32xf32>
    %215 = vector.shape_cast %214 : vector<1x2x32xf32> to vector<2x32xf32>
    %216 = vector.shape_cast %211 : vector<2x32xf32> to vector<1x2x32xf32>
    tpu.vector_store %arg10[%213, %c0_65, %c0_66], %216 {strides = array<i32>} : memref<8x2x32xf32, #tpu.memory_space<vmem>>, vector<1x2x32xf32>,
    %c5_i32 = arith.constant 5 : i32
    %217 = arith.index_cast %c5_i32 : i32 to index
    %c0_67 = arith.constant 0 : index
    %c0_68 = arith.constant 0 : index
    %218 = vector.load %arg8[%217, %c0_67, %c0_68] : memref<8x2x256xf32, #tpu.memory_space<vmem>>, vector<1x2x256xf32>
    %219 = vector.shape_cast %218 : vector<1x2x256xf32> to vector<2x256xf32>
    %cst_69 = arith.constant dense<0.000000e+00> : vector<2x256xf32>
    %220 = tpu.matmul %205, %9, %cst_69 {dimension_numbers = #tpu.dot_dimension_numbers<[1], [0], [0], [1], [0, 0, 1, 1], [], []>} : vector<2x64xf32>, vector<64x256xf32>, vector<2x256xf32> -> vector<2x256xf32>
    %221 = arith.addf %219, %220 : vector<2x256xf32>
    %222 = vector.extract_strided_slice %221 {offsets = [0, 0], sizes = [2, 64], strides = [1, 1]} : vector<2x256xf32> to vector<2x64xf32>
    %223 = arith.negf %222 : vector<2x64xf32>
    %224 = math.exp %223 : vector<2x64xf32>
    %cst_70 = arith.constant 1.000000e+00 : f32
    %225 = vector.broadcast %cst_70 : f32 to vector<2x64xf32>
    %226 = arith.addf %225, %224 : vector<2x64xf32>
    %227 = arith.divf %225, %226 : vector<2x64xf32>
    %228 = vector.extract_strided_slice %221 {offsets = [0, 64], sizes = [2, 64], strides = [1, 1]} : vector<2x256xf32> to vector<2x64xf32>
    %229 = arith.negf %228 : vector<2x64xf32>
    %230 = math.exp %229 : vector<2x64xf32>
    %cst_71 = arith.constant 1.000000e+00 : f32
    %231 = vector.broadcast %cst_71 : f32 to vector<2x64xf32>
    %232 = arith.addf %231, %230 : vector<2x64xf32>
    %233 = arith.divf %231, %232 : vector<2x64xf32>
    %234 = vector.extract_strided_slice %221 {offsets = [0, 128], sizes = [2, 64], strides = [1, 1]} : vector<2x256xf32> to vector<2x64xf32>
    %235 = math.tanh %234 : vector<2x64xf32>
    %236 = vector.extract_strided_slice %221 {offsets = [0, 192], sizes = [2, 64], strides = [1, 1]} : vector<2x256xf32> to vector<2x64xf32>
    %237 = arith.negf %236 : vector<2x64xf32>
    %238 = math.exp %237 : vector<2x64xf32>
    %cst_72 = arith.constant 1.000000e+00 : f32
    %239 = vector.broadcast %cst_72 : f32 to vector<2x64xf32>
    %240 = arith.addf %239, %238 : vector<2x64xf32>
    %241 = arith.divf %239, %240 : vector<2x64xf32>
    %242 = arith.mulf %233, %203 : vector<2x64xf32>
    %243 = arith.mulf %227, %235 : vector<2x64xf32>
    %244 = arith.addf %242, %243 : vector<2x64xf32>
    %245 = math.tanh %244 : vector<2x64xf32>
    %246 = arith.mulf %241, %245 : vector<2x64xf32>
    %247 = vector.extract_strided_slice %246 {offsets = [0, 0], sizes = [2, 32], strides = [1, 1]} : vector<2x64xf32> to vector<2x32xf32>
    %248 = arith.index_cast %c5_i32 : i32 to index
    %c0_73 = arith.constant 0 : index
    %c0_74 = arith.constant 0 : index
    %249 = vector.load %arg9[%248, %c0_73, %c0_74] : memref<8x2x32xf32, #tpu.memory_space<vmem>>, vector<1x2x32xf32>
    %250 = vector.shape_cast %249 : vector<1x2x32xf32> to vector<2x32xf32>
    %251 = vector.shape_cast %247 : vector<2x32xf32> to vector<1x2x32xf32>
    tpu.vector_store %arg9[%248, %c0_73, %c0_74], %251 {strides = array<i32>} : memref<8x2x32xf32, #tpu.memory_space<vmem>>, vector<1x2x32xf32>,
    %252 = vector.extract_strided_slice %246 {offsets = [0, 32], sizes = [2, 32], strides = [1, 1]} : vector<2x64xf32> to vector<2x32xf32>
    %c7_i32_75 = arith.constant 7 : i32
    %253 = arith.subi %c7_i32_75, %c5_i32 : i32
    %254 = arith.index_cast %253 : i32 to index
    %c0_76 = arith.constant 0 : index
    %c0_77 = arith.constant 0 : index
    %255 = vector.load %arg10[%254, %c0_76, %c0_77] : memref<8x2x32xf32, #tpu.memory_space<vmem>>, vector<1x2x32xf32>
    %256 = vector.shape_cast %255 : vector<1x2x32xf32> to vector<2x32xf32>
    %257 = vector.shape_cast %252 : vector<2x32xf32> to vector<1x2x32xf32>
    tpu.vector_store %arg10[%254, %c0_76, %c0_77], %257 {strides = array<i32>} : memref<8x2x32xf32, #tpu.memory_space<vmem>>, vector<1x2x32xf32>,
    %c6_i32 = arith.constant 6 : i32
    %258 = arith.index_cast %c6_i32 : i32 to index
    %c0_78 = arith.constant 0 : index
    %c0_79 = arith.constant 0 : index
    %259 = vector.load %arg8[%258, %c0_78, %c0_79] : memref<8x2x256xf32, #tpu.memory_space<vmem>>, vector<1x2x256xf32>
    %260 = vector.shape_cast %259 : vector<1x2x256xf32> to vector<2x256xf32>
    %cst_80 = arith.constant dense<0.000000e+00> : vector<2x256xf32>
    %261 = tpu.matmul %246, %9, %cst_80 {dimension_numbers = #tpu.dot_dimension_numbers<[1], [0], [0], [1], [0, 0, 1, 1], [], []>} : vector<2x64xf32>, vector<64x256xf32>, vector<2x256xf32> -> vector<2x256xf32>
    %262 = arith.addf %260, %261 : vector<2x256xf32>
    %263 = vector.extract_strided_slice %262 {offsets = [0, 0], sizes = [2, 64], strides = [1, 1]} : vector<2x256xf32> to vector<2x64xf32>
    %264 = arith.negf %263 : vector<2x64xf32>
    %265 = math.exp %264 : vector<2x64xf32>
    %cst_81 = arith.constant 1.000000e+00 : f32
    %266 = vector.broadcast %cst_81 : f32 to vector<2x64xf32>
    %267 = arith.addf %266, %265 : vector<2x64xf32>
    %268 = arith.divf %266, %267 : vector<2x64xf32>
    %269 = vector.extract_strided_slice %262 {offsets = [0, 64], sizes = [2, 64], strides = [1, 1]} : vector<2x256xf32> to vector<2x64xf32>
    %270 = arith.negf %269 : vector<2x64xf32>
    %271 = math.exp %270 : vector<2x64xf32>
    %cst_82 = arith.constant 1.000000e+00 : f32
    %272 = vector.broadcast %cst_82 : f32 to vector<2x64xf32>
    %273 = arith.addf %272, %271 : vector<2x64xf32>
    %274 = arith.divf %272, %273 : vector<2x64xf32>
    %275 = vector.extract_strided_slice %262 {offsets = [0, 128], sizes = [2, 64], strides = [1, 1]} : vector<2x256xf32> to vector<2x64xf32>
    %276 = math.tanh %275 : vector<2x64xf32>
    %277 = vector.extract_strided_slice %262 {offsets = [0, 192], sizes = [2, 64], strides = [1, 1]} : vector<2x256xf32> to vector<2x64xf32>
    %278 = arith.negf %277 : vector<2x64xf32>
    %279 = math.exp %278 : vector<2x64xf32>
    %cst_83 = arith.constant 1.000000e+00 : f32
    %280 = vector.broadcast %cst_83 : f32 to vector<2x64xf32>
    %281 = arith.addf %280, %279 : vector<2x64xf32>
    %282 = arith.divf %280, %281 : vector<2x64xf32>
    %283 = arith.mulf %274, %244 : vector<2x64xf32>
    %284 = arith.mulf %268, %276 : vector<2x64xf32>
    %285 = arith.addf %283, %284 : vector<2x64xf32>
    %286 = math.tanh %285 : vector<2x64xf32>
    %287 = arith.mulf %282, %286 : vector<2x64xf32>
    %288 = vector.extract_strided_slice %287 {offsets = [0, 0], sizes = [2, 32], strides = [1, 1]} : vector<2x64xf32> to vector<2x32xf32>
    %289 = arith.index_cast %c6_i32 : i32 to index
    %c0_84 = arith.constant 0 : index
    %c0_85 = arith.constant 0 : index
    %290 = vector.load %arg9[%289, %c0_84, %c0_85] : memref<8x2x32xf32, #tpu.memory_space<vmem>>, vector<1x2x32xf32>
    %291 = vector.shape_cast %290 : vector<1x2x32xf32> to vector<2x32xf32>
    %292 = vector.shape_cast %288 : vector<2x32xf32> to vector<1x2x32xf32>
    tpu.vector_store %arg9[%289, %c0_84, %c0_85], %292 {strides = array<i32>} : memref<8x2x32xf32, #tpu.memory_space<vmem>>, vector<1x2x32xf32>,
    %293 = vector.extract_strided_slice %287 {offsets = [0, 32], sizes = [2, 32], strides = [1, 1]} : vector<2x64xf32> to vector<2x32xf32>
    %c7_i32_86 = arith.constant 7 : i32
    %294 = arith.subi %c7_i32_86, %c6_i32 : i32
    %295 = arith.index_cast %294 : i32 to index
    %c0_87 = arith.constant 0 : index
    %c0_88 = arith.constant 0 : index
    %296 = vector.load %arg10[%295, %c0_87, %c0_88] : memref<8x2x32xf32, #tpu.memory_space<vmem>>, vector<1x2x32xf32>
    %297 = vector.shape_cast %296 : vector<1x2x32xf32> to vector<2x32xf32>
    %298 = vector.shape_cast %293 : vector<2x32xf32> to vector<1x2x32xf32>
    tpu.vector_store %arg10[%295, %c0_87, %c0_88], %298 {strides = array<i32>} : memref<8x2x32xf32, #tpu.memory_space<vmem>>, vector<1x2x32xf32>,
    %c7_i32_89 = arith.constant 7 : i32
    %299 = arith.index_cast %c7_i32_89 : i32 to index
    %c0_90 = arith.constant 0 : index
    %c0_91 = arith.constant 0 : index
    %300 = vector.load %arg8[%299, %c0_90, %c0_91] : memref<8x2x256xf32, #tpu.memory_space<vmem>>, vector<1x2x256xf32>
    %301 = vector.shape_cast %300 : vector<1x2x256xf32> to vector<2x256xf32>
    %cst_92 = arith.constant dense<0.000000e+00> : vector<2x256xf32>
    %302 = tpu.matmul %287, %9, %cst_92 {dimension_numbers = #tpu.dot_dimension_numbers<[1], [0], [0], [1], [0, 0, 1, 1], [], []>} : vector<2x64xf32>, vector<64x256xf32>, vector<2x256xf32> -> vector<2x256xf32>
    %303 = arith.addf %301, %302 : vector<2x256xf32>
    %304 = vector.extract_strided_slice %303 {offsets = [0, 0], sizes = [2, 64], strides = [1, 1]} : vector<2x256xf32> to vector<2x64xf32>
    %305 = arith.negf %304 : vector<2x64xf32>
    %306 = math.exp %305 : vector<2x64xf32>
    %cst_93 = arith.constant 1.000000e+00 : f32
    %307 = vector.broadcast %cst_93 : f32 to vector<2x64xf32>
    %308 = arith.addf %307, %306 : vector<2x64xf32>
    %309 = arith.divf %307, %308 : vector<2x64xf32>
    %310 = vector.extract_strided_slice %303 {offsets = [0, 64], sizes = [2, 64], strides = [1, 1]} : vector<2x256xf32> to vector<2x64xf32>
    %311 = arith.negf %310 : vector<2x64xf32>
    %312 = math.exp %311 : vector<2x64xf32>
    %cst_94 = arith.constant 1.000000e+00 : f32
    %313 = vector.broadcast %cst_94 : f32 to vector<2x64xf32>
    %314 = arith.addf %313, %312 : vector<2x64xf32>
    %315 = arith.divf %313, %314 : vector<2x64xf32>
    %316 = vector.extract_strided_slice %303 {offsets = [0, 128], sizes = [2, 64], strides = [1, 1]} : vector<2x256xf32> to vector<2x64xf32>
    %317 = math.tanh %316 : vector<2x64xf32>
    %318 = vector.extract_strided_slice %303 {offsets = [0, 192], sizes = [2, 64], strides = [1, 1]} : vector<2x256xf32> to vector<2x64xf32>
    %319 = arith.negf %318 : vector<2x64xf32>
    %320 = math.exp %319 : vector<2x64xf32>
    %cst_95 = arith.constant 1.000000e+00 : f32
    %321 = vector.broadcast %cst_95 : f32 to vector<2x64xf32>
    %322 = arith.addf %321, %320 : vector<2x64xf32>
    %323 = arith.divf %321, %322 : vector<2x64xf32>
    %324 = arith.mulf %315, %285 : vector<2x64xf32>
    %325 = arith.mulf %309, %317 : vector<2x64xf32>
    %326 = arith.addf %324, %325 : vector<2x64xf32>
    %327 = math.tanh %326 : vector<2x64xf32>
    %328 = arith.mulf %323, %327 : vector<2x64xf32>
    %329 = vector.extract_strided_slice %328 {offsets = [0, 0], sizes = [2, 32], strides = [1, 1]} : vector<2x64xf32> to vector<2x32xf32>
    %330 = arith.index_cast %c7_i32_89 : i32 to index
    %c0_96 = arith.constant 0 : index
    %c0_97 = arith.constant 0 : index
    %331 = vector.load %arg9[%330, %c0_96, %c0_97] : memref<8x2x32xf32, #tpu.memory_space<vmem>>, vector<1x2x32xf32>
    %332 = vector.shape_cast %331 : vector<1x2x32xf32> to vector<2x32xf32>
    %333 = vector.shape_cast %329 : vector<2x32xf32> to vector<1x2x32xf32>
    tpu.vector_store %arg9[%330, %c0_96, %c0_97], %333 {strides = array<i32>} : memref<8x2x32xf32, #tpu.memory_space<vmem>>, vector<1x2x32xf32>,
    %334 = vector.extract_strided_slice %328 {offsets = [0, 32], sizes = [2, 32], strides = [1, 1]} : vector<2x64xf32> to vector<2x32xf32>
    %c7_i32_98 = arith.constant 7 : i32
    %335 = arith.subi %c7_i32_98, %c7_i32_89 : i32
    %336 = arith.index_cast %335 : i32 to index
    %c0_99 = arith.constant 0 : index
    %c0_100 = arith.constant 0 : index
    %337 = vector.load %arg10[%336, %c0_99, %c0_100] : memref<8x2x32xf32, #tpu.memory_space<vmem>>, vector<1x2x32xf32>
    %338 = vector.shape_cast %337 : vector<1x2x32xf32> to vector<2x32xf32>
    %339 = vector.shape_cast %334 : vector<2x32xf32> to vector<1x2x32xf32>
    tpu.vector_store %arg10[%336, %c0_99, %c0_100], %339 {strides = array<i32>} : memref<8x2x32xf32, #tpu.memory_space<vmem>>, vector<1x2x32xf32>,
    %c8_i32 = arith.constant 8 : i32
    %c0_101 = arith.constant 0 : index
    %c0_102 = arith.constant 0 : index
    %c0_103 = arith.constant 0 : index
    %340 = vector.load %arg9[%c0_101, %c0_102, %c0_103] : memref<8x2x32xf32, #tpu.memory_space<vmem>>, vector<8x2x32xf32>
    %c0_104 = arith.constant 0 : index
    %c0_105 = arith.constant 0 : index
    %c0_106 = arith.constant 0 : index
    %341 = vector.load %arg10[%c0_104, %c0_105, %c0_106] : memref<8x2x32xf32, #tpu.memory_space<vmem>>, vector<8x2x32xf32>
    %342 = tpu.concatenate %340, %341 in 2 : vector<8x2x32xf32>, vector<8x2x32xf32> -> vector<8x2x64xf32>
    %343 = vector.shape_cast %342 : vector<8x2x64xf32> to vector<16x64xf32>
    %c0_107 = arith.constant 0 : index
    %c0_108 = arith.constant 0 : index
    %344 = vector.load %arg5[%c0_107, %c0_108] : memref<64x16xf32, #tpu.memory_space<vmem>>, vector<64x16xf32>
    %cst_109 = arith.constant dense<0.000000e+00> : vector<16x16xf32>
    %345 = tpu.matmul %343, %344, %cst_109 {dimension_numbers = #tpu.dot_dimension_numbers<[1], [0], [0], [1], [0, 0, 1, 1], [], []>} : vector<16x64xf32>, vector<64x16xf32>, vector<16x16xf32> -> vector<16x16xf32>
    %c0_110 = arith.constant 0 : index
    %c0_111 = arith.constant 0 : index
    %346 = vector.load %arg6[%c0_110, %c0_111] : memref<1x16xf32, #tpu.memory_space<vmem>>, vector<1x16xf32>
    %347 = vector.broadcast %346 : vector<1x16xf32> to vector<16x16xf32>
    %348 = arith.addf %345, %347 : vector<16x16xf32>
    %349 = vector.shape_cast %348 : vector<16x16xf32> to vector<8x2x16xf32>
    %c0_112 = arith.constant 0 : index
    %c0_113 = arith.constant 0 : index
    %c0_114 = arith.constant 0 : index
    %350 = vector.load %arg7[%c0_112, %c0_113, %c0_114] : memref<8x2x16xf32, #tpu.memory_space<vmem>>, vector<8x2x16xf32>
    tpu.vector_store %arg7[%c0_112, %c0_113, %c0_114], %349 {strides = array<i32>} : memref<8x2x16xf32, #tpu.memory_space<vmem>>, vector<8x2x16xf32>,
    return
  }
  func.func @transform_0(%arg0: i32) -> (i32, i32, i32) {
    %c0_i32 = arith.constant 0 : i32
    %c0_i32_0 = arith.constant 0 : i32
    %c0_i32_1 = arith.constant 0 : i32
    %c0_i32_2 = arith.constant 0 : i32
    return %c0_i32, %c0_i32_0, %c0_i32_1 : i32, i32, i32
  }
  func.func @transform_1(%arg0: i32) -> (i32, i32) {
    %c0_i32 = arith.constant 0 : i32
    %c0_i32_0 = arith.constant 0 : i32
    %c0_i32_1 = arith.constant 0 : i32
    return %c0_i32, %c0_i32_0 : i32, i32
  }
  func.func @transform_2(%arg0: i32) -> (i32, i32) {
    %c0_i32 = arith.constant 0 : i32
    %c0_i32_0 = arith.constant 0 : i32
    %c0_i32_1 = arith.constant 0 : i32
    return %c0_i32, %c0_i32_0 : i32, i32
  }
  func.func @transform_3(%arg0: i32) -> (i32, i32) {
    %c0_i32 = arith.constant 0 : i32
    %c0_i32_0 = arith.constant 0 : i32
    %c0_i32_1 = arith.constant 0 : i32
    return %c0_i32, %c0_i32_0 : i32, i32
  }
  func.func @transform_4(%arg0: i32) -> (i32, i32) {
    %c0_i32 = arith.constant 0 : i32
    %c0_i32_0 = arith.constant 0 : i32
    %c0_i32_1 = arith.constant 0 : i32
    return %c0_i32, %c0_i32_0 : i32, i32
  }
  func.func @transform_5(%arg0: i32) -> (i32, i32) {
    %c0_i32 = arith.constant 0 : i32
    %c0_i32_0 = arith.constant 0 : i32
    %c0_i32_1 = arith.constant 0 : i32
    return %c0_i32, %c0_i32_0 : i32, i32
  }
  func.func @transform_6(%arg0: i32) -> (i32, i32, i32) {
    %c0_i32 = arith.constant 0 : i32
    %c0_i32_0 = arith.constant 0 : i32
    %c0_i32_1 = arith.constant 0 : i32
    %c0_i32_2 = arith.constant 0 : i32
    return %c0_i32, %c0_i32_0, %c0_i32_1 : i32, i32, i32
  }
}

</mosaic_0001>

<llo_original>
// kernel: tpu_custom_call.1
$region0: #{tpu_custom_call.1}
  #allocation0 [shape = 'u32[]', space=smem, size = 0x4, offset = 0x4, fixed_abs, tag = 'smem constant byte address 0x4 - core index']
  #allocation1 [shape = 'u32[144,128]{1,0:T(1,128)}', space=vmem, size = 0x12000, scoped, tag = 'internal scratch']
  #allocation2 [shape = 'f32[8,2,256]{2,1,0:T(2,128)}', space=vmem, size = 0x4000, scoped, tag = 'scratch operand']
  #allocation3 [shape = 'f32[8,2,32]{2,1,0:T(2,128)}', space=vmem, size = 0x2000, scoped, tag = 'scratch operand']
  #allocation4 [shape = 'f32[8,2,32]{2,1,0:T(2,128)}', space=vmem, size = 0x2000, scoped, tag = 'scratch operand']
  %s0 = inlined_call_operand.vmem [shape: f32[8,2,32], index: 0, kind: input, shape index: {}]
  %s1 = inlined_call_operand.vmem [shape: f32[32,256], index: 1, kind: input, shape index: {}]
  %s2 = inlined_call_operand.vmem [shape: f32[1,256], index: 2, kind: input, shape index: {}]
  %s3 = inlined_call_operand.hbm [shape: f32[64,256], index: 3, kind: input, shape index: {}]
  %s4 = inlined_call_operand.vmem [shape: f32[64,16], index: 4, kind: input, shape index: {}]
  %s5 = inlined_call_operand.vmem [shape: f32[1,16], index: 5, kind: input, shape index: {}]
  %s6 = inlined_call_operand.hbm [shape: f32[8,2,16], index: 6, kind: output, shape index: {}]
  %s7 = sld [smem:[#allocation0]]
  $region38: #{tpu_custom_call.1} parent=0
    _
  %s9 = ssub.s32 1, %s7
  %s10 = scalar_select 0, %s9, %s7
  $region1: #{tpu_custom_call.1} parent=0
    #allocation5 [shape = 'u8[65536]{0}', space=vmem, size = 0x10000, scoped, tag = 'input window, operand 3, single buffered']
    #allocation6 [shape = 's32[1]{0}', space=sflag, size = 0x4, scoped, tag = 'scoped memory for tpu_custom_call.1']
    #allocation7 [shape = 's32[1]{0}', space=sflag, size = 0x4, scoped, tag = 'scoped memory for tpu_custom_call.1']
    #allocation8 [shape = 'u8[8192]{0}', space=vmem, size = 0x2000, scoped, tag = 'output window, operand 0, single buffered']
    %11 = vsyncpa [#allocation6], 0
    %12 = vsyncpa [#allocation7], 0
    // Predicated region
    $region2: #{tpu_custom_call.1} parent=1 // pred_check
      _
    $region3: #{tpu_custom_call.1} parent=1 // pred_check_branch
      %14 = sbr.rel (0) target = $region5
    $region4: #{tpu_custom_call.1} parent=1 // pred_region
      _
    $region5: #{tpu_custom_call.1} parent=1 // pred_fallthru
      _
    // Predicated region
    $region6: #{tpu_custom_call.1} parent=1 // pred_check
      _
    $region7: #{tpu_custom_call.1} parent=1 // pred_check_branch
      %16 = sbr.rel (0) target = $region9
    $region8: #{tpu_custom_call.1} parent=1 // pred_region
      _
    $region9: #{tpu_custom_call.1} parent=1 // pred_fallthru
      _
    // Predicated region
    $region10: #{tpu_custom_call.1} parent=1 // pred_check
      _
    $region11: #{tpu_custom_call.1} parent=1 // pred_check_branch
      %18 = sbr.rel (0) target = $region13
    $region12: #{tpu_custom_call.1} parent=1 // pred_region
      _
    $region13: #{tpu_custom_call.1} parent=1 // pred_fallthru
      _
    // Predicated region
    $region14: #{tpu_custom_call.1} parent=1 // pred_check
      _
    $region15: #{tpu_custom_call.1} parent=1 // pred_check_branch
      %20 = sbr.rel (0) target = $region17
    $region16: #{tpu_custom_call.1} parent=1 // pred_region
      %s22 = ssub.s32 2048, 2048
      %23 = vsyncadd [#allocation6], %s22
      %s24 = sshll.u32 [#allocation5], 4
      %s25 = int_to_ptr.vmem [resolvable:$true] %s24
      %30 = dma.hbm_to_vmem [thread:$0]  %s3, 2048, %s25, [#allocation6], 256, 256, 16
    $region17: #{tpu_custom_call.1} parent=1 // pred_fallthru
      _
    // Predicated region
    $region18: #{tpu_custom_call.1} parent=1 // pred_check
      _
    $region19: #{tpu_custom_call.1} parent=1 // pred_check_branch
      %32 = sbr.rel (0) target = $region21
    $region20: #{tpu_custom_call.1} parent=1 // pred_region
      _
    $region21: #{tpu_custom_call.1} parent=1 // pred_fallthru
      _
    // Predicated region
    $region22: #{tpu_custom_call.1} parent=1 // pred_check
      _
    $region23: #{tpu_custom_call.1} parent=1 // pred_check_branch
      %34 = sbr.rel (0) target = $region25
    $region24: #{tpu_custom_call.1} parent=1 // pred_region
      _
    $region25: #{tpu_custom_call.1} parent=1 // pred_fallthru
      _
    // Predicated region
    $region26: #{tpu_custom_call.1} parent=1 // pred_check
      _
    $region27: #{tpu_custom_call.1} parent=1 // pred_check_branch
      %36 = sbr.rel (0) target = $region29
    $region28: #{tpu_custom_call.1} parent=1 // pred_region
      %37 = dma.done [#allocation6], 2048
    $region29: #{tpu_custom_call.1} parent=1 // pred_fallthru
      _
    %v38 = vld [vmem:[%s0] sm:$0x3]
    %v39 = vld [vmem:[%s0 + $0x2] sm:$0x3]
    %v40 = vld [vmem:[%s0 + $0x4] sm:$0x3]
    %v41 = vld [vmem:[%s0 + $0x6] sm:$0x3]
    %v42 = vld [vmem:[%s0 + $0x8] sm:$0x3]
    %v43 = vld [vmem:[%s0 + $0xa] sm:$0x3]
    %v44 = vld [vmem:[%s0 + $0xc] sm:$0x3]
    %v45 = vld [vmem:[%s0 + $0xe] sm:$0x3]
    %v46 = vld [vmem:[%s1] sm:$0xff]
    %v47 = vld [vmem:[%s1 + $0x8] sm:$0xff]
    %v48 = vld [vmem:[%s1 + $0x10] sm:$0xff]
    %v49 = vld [vmem:[%s1 + $0x18] sm:$0xff]
    %v50 = vld [vmem:[%s1 + $0x20] sm:$0xff]
    %v51 = vld [vmem:[%s1 + $0x28] sm:$0xff]
    %v52 = vld [vmem:[%s1 + $0x30] sm:$0xff]
    %v53 = vld [vmem:[%s1 + $0x38] sm:$0xff]
    %v54 = vld [vmem:[%s2] sm:$0x3]
    %v56 = vlaneseq
    %v57 = vshrl.u32 %v56, 7
    %v58 = vsub.s32 0, %v57
    %v59 = vrot.slane %v54, %v58
    %v60 = vlaneseq
    %v61 = vshrl.u32 %v60, 7
    %v62 = vsub.s32 1, %v61
    %v63 = vrot.slane %v54, %v62
    %v74 = vcombine.low %v38, %v39
    %v75 = vcombine.low %v40, %v41
    %v77 = vunpack.c.l.s4 1983009808
    %v78 = vunpack.c.0.s8 %v77
    %v79 = vlaneseq
    %v80 = vshrl.u32 %v79, 7
    %v81 = vsub.s32 %v78, %v80
    %v82 = vrot.slane %v74, %v81
    %v84 = vunpack.c.l.s4 1983009808
    %v85 = vunpack.c.0.s8 %v84
    %v86 = vlaneseq
    %v87 = vshrl.u32 %v86, 7
    %v88 = vsub.s32 %v85, %v87
    %v89 = vrot.slane %v75, %v88
    %v90 = vcombine.low %v82, %v89
    %v91 = vcombine.low %v42, %v43
    %v92 = vcombine.low %v44, %v45
    %v94 = vunpack.c.l.s4 1983009808
    %v95 = vunpack.c.0.s8 %v94
    %v96 = vlaneseq
    %v97 = vshrl.u32 %v96, 7
    %v98 = vsub.s32 %v95, %v97
    %v99 = vrot.slane %v91, %v98
    %v101 = vunpack.c.l.s4 1983009808
    %v102 = vunpack.c.0.s8 %v101
    %v103 = vlaneseq
    %v104 = vshrl.u32 %v103, 7
    %v105 = vsub.s32 %v102, %v104
    %v106 = vrot.slane %v92, %v105
    %v107 = vcombine.low %v99, %v106
    %vm108 = vcmask 261120
    %v109 = vsel %vm108, %v90, 0
    %v111 = vsel %vm108, %v107, 0
    %113 = vmatprep.subr.mxu0 0.0
    %114 = vmatpush1.msra.mxu0 0.0
    %115 = vmatprep.subr.mxu0 0.0
    %116 = vmatpush1.msra.mxu0 0.0
    %117 = vmatprep.subr.mxu0 0.0
    %118 = vmatpush1.msra.mxu0 0.0
    %119 = vmatprep.subr.mxu0 0.0
    %120 = vmatpush1.msra.mxu0 0.0
    %121 = vmatprep.subr.mxu0 0.0
    %122 = vmatpush1.msra.mxu0 0.0
    %123 = vmatprep.subr.mxu0 0.0
    %124 = vmatpush1.msra.mxu0 0.0
    %125 = vmatprep.subr.mxu0 0.0
    %126 = vmatpush1.msra.mxu0 0.0
    %127 = vmatprep.subr.mxu0 0.0
    %128 = vmatpush1.msra.mxu0 0.0
    %129 = vmatprep.subr.mxu0 0.0
    %130 = vmatpush1.msra.mxu0 0.0
    %131 = vmatprep.subr.mxu0 0.0
    %132 = vmatpush1.msra.mxu0 0.0
    %133 = vmatprep.subr.mxu0 0.0
    %134 = vmatpush1.msra.mxu0 0.0
    %135 = vmatprep.subr.mxu0 0.0
    %136 = vmatpush1.msra.mxu0 0.0
    %137 = vmatprep.subr.mxu0 %v53
    %138 = vmatpush1.msra.mxu0 %v52
    %139 = vmatprep.subr.mxu0 %v51
    %140 = vmatpush1.msra.mxu0 %v50
    %141 = vmatprep.subr.mxu0 %v49
    %142 = vmatpush1.msra.mxu0 %v48
    %143 = vmatprep.subr.mxu0 %v47
    %144 = vmatpush1.msra.mxu0 %v46
    %145 = vmatprep.subr.mxu0 0.0
    %146 = vmatpush2.msra.mxu0 0.0
    %147 = vmatprep.subr.mxu0 0.0
    %148 = vmatpush2.msra.mxu0 0.0
    %149 = vmatprep.subr.mxu0 0.0
    %150 = vmatpush2.msra.mxu0 0.0
    %151 = vmatprep.subr.mxu0 0.0
    %152 = vmatpush2.msra.mxu0 0.0
    %153 = vmatprep.subr.mxu0 0.0
    %154 = vmatpush2.msra.mxu0 0.0
    %155 = vmatprep.subr.mxu0 0.0
    %156 = vmatpush2.msra.mxu0 0.0
    %157 = vmatprep.subr.mxu0 0.0
    %158 = vmatpush2.msra.mxu0 0.0
    %159 = vmatprep.subr.mxu0 0.0
    %160 = vmatpush2.msra.mxu0 0.0
    %161 = vmatprep.subr.mxu0 0.0
    %162 = vmatpush2.msra.mxu0 0.0
    %163 = vmatprep.subr.mxu0 0.0
    %164 = vmatpush2.msra.mxu0 0.0
    %165 = vmatprep.subr.mxu0 0.0
    %166 = vmatpush2.msra.mxu0 0.0
    %167 = vmatprep.subr.mxu0 0.0
    %168 = vmatpush2.msra.mxu0 0.0
    %169 = vmatprep.subr.mxu0 0.0
    %170 = vmatpush2.msra.mxu0 0.0
    %171 = vmatprep.subr.mxu0 0.0
    %172 = vmatpush2.msra.mxu0 0.0
    %173 = vmatprep.subr.mxu0 0.0
    %174 = vmatpush2.msra.mxu0 0.0
    %175 = vmatprep.subr.mxu0 0.0
    %176 = vmatpush2.msra.mxu0 0.0
    %177 = vmatprep.mubr.f32.mxu0 0.0
    %178 = vmatmul.mubr.f32.gmra.mxu0 %v109
    %v179 = vpop.f32.mrf.mxu0
    %v180 = vadd.f32 %v59, %v179
    %v181 = vpop.f32.mrf.mxu0
    %v182 = vadd.f32 %v63, %v181
    %183 = vmatprep.mubr.f32.mxu0 0.0
    %184 = vmatmul.mubr.f32.gmra.mxu0 %v111
    %v185 = vpop.f32.mrf.mxu0
    %v186 = vadd.f32 %v59, %v185
    %v187 = vpop.f32.mrf.mxu0
    %v188 = vadd.f32 %v63, %v187
    %189 = vdwg.mxu0
    %v194 = vcombine.low %v180, %v182
    %v195 = vcombine.high %v180, %v182
    %v197 = vunpack.c.l.s4 1983009808
    %v198 = vunpack.c.0.s8 %v197
    %v199 = vlaneseq
    %v200 = vshrl.u32 %v199, 7
    %v201 = vsub.s32 %v198, %v200
    %v202 = vrot.slane %v194, %v201
    %v204 = vunpack.c.l.s4 1983009808
    %v205 = vunpack.c.0.s8 %v204
    %v206 = vlaneseq
    %v207 = vshrl.u32 %v206, 7
    %v208 = vsub.s32 %v205, %v207
    %v209 = vrot.slane %v195, %v208
    %v210 = vcombine.high %v202, %v202
    %v211 = vcombine.high %v209, %v209
    %v212 = vcombine.low %v186, %v188
    %v213 = vcombine.high %v186, %v188
    %v215 = vunpack.c.l.s4 1983009808
    %v216 = vunpack.c.0.s8 %v215
    %v217 = vlaneseq
    %v218 = vshrl.u32 %v217, 7
    %v219 = vsub.s32 %v216, %v218
    %v220 = vrot.slane %v212, %v219
    %v222 = vunpack.c.l.s4 1983009808
    %v223 = vunpack.c.0.s8 %v222
    %v224 = vlaneseq
    %v225 = vshrl.u32 %v224, 7
    %v226 = vsub.s32 %v223, %v225
    %v227 = vrot.slane %v213, %v226
    %v228 = vcombine.high %v220, %v220
    %v229 = vcombine.high %v227, %v227
    %238 = vst [vmem:[#allocation2] sm:$0xf] %v202
    %239 = vst [vmem:[#allocation2 + $0x4] sm:$0xf] %v210
    %240 = vst [vmem:[#allocation2 + $0x8] sm:$0xf] %v209
    %241 = vst [vmem:[#allocation2 + $0xc] sm:$0xf] %v211
    %242 = vst [vmem:[#allocation2 + $0x10] sm:$0xf] %v220
    %243 = vst [vmem:[#allocation2 + $0x14] sm:$0xf] %v228
    %244 = vst [vmem:[#allocation2 + $0x18] sm:$0xf] %v227
    %245 = vst [vmem:[#allocation2 + $0x1c] sm:$0xf] %v229
    %v246 = vld [vmem:[#allocation5] sm:$0xff]
    %v247 = vld [vmem:[#allocation5 + $0x8] sm:$0xff]
    %v248 = vld [vmem:[#allocation5 + $0x10] sm:$0xff]
    %v249 = vld [vmem:[#allocation5 + $0x18] sm:$0xff]
    %v250 = vld [vmem:[#allocation5 + $0x20] sm:$0xff]
    %v251 = vld [vmem:[#allocation5 + $0x28] sm:$0xff]
    %v252 = vld [vmem:[#allocation5 + $0x30] sm:$0xff]
    %v253 = vld [vmem:[#allocation5 + $0x38] sm:$0xff]
    %v254 = vld [vmem:[#allocation5 + $0x40] sm:$0xff]
    %v255 = vld [vmem:[#allocation5 + $0x48] sm:$0xff]
    %v256 = vld [vmem:[#allocation5 + $0x50] sm:$0xff]
    %v257 = vld [vmem:[#allocation5 + $0x58] sm:$0xff]
    %v258 = vld [vmem:[#allocation5 + $0x60] sm:$0xff]
    %v259 = vld [vmem:[#allocation5 + $0x68] sm:$0xff]
    %v260 = vld [vmem:[#allocation5 + $0x70] sm:$0xff]
    %v261 = vld [vmem:[#allocation5 + $0x78] sm:$0xff]
    %v262 = vld [vmem:[#allocation2] sm:$0xf]
    %vm263 = vcmask 523264
    %v265 = vsel %vm263, 0.0, 0
    %267 = vmatprep.subr.mxu0 0.0
    %268 = vmatpush1.msra.mxu0 0.0
    %269 = vmatprep.subr.mxu0 0.0
    %270 = vmatpush1.msra.mxu0 0.0
    %271 = vmatprep.subr.mxu0 0.0
    %272 = vmatpush1.msra.mxu0 0.0
    %273 = vmatprep.subr.mxu0 0.0
    %274 = vmatpush1.msra.mxu0 0.0
    %275 = vmatprep.subr.mxu0 0.0
    %276 = vmatpush1.msra.mxu0 0.0
    %277 = vmatprep.subr.mxu0 0.0
    %278 = vmatpush1.msra.mxu0 0.0
    %279 = vmatprep.subr.mxu0 0.0
    %280 = vmatpush1.msra.mxu0 0.0
    %281 = vmatprep.subr.mxu0 0.0
    %282 = vmatpush1.msra.mxu0 0.0
    %283 = vmatprep.subr.mxu0 %v261
    %284 = vmatpush1.msra.mxu0 %v260
    %285 = vmatprep.subr.mxu0 %v259
    %286 = vmatpush1.msra.mxu0 %v258
    %287 = vmatprep.subr.mxu0 %v257
    %288 = vmatpush1.msra.mxu0 %v256
    %289 = vmatprep.subr.mxu0 %v255
    %290 = vmatpush1.msra.mxu0 %v254
    %291 = vmatprep.subr.mxu0 %v253
    %292 = vmatpush1.msra.mxu0 %v252
    %293 = vmatprep.subr.mxu0 %v251
    %294 = vmatpush1.msra.mxu0 %v250
    %295 = vmatprep.subr.mxu0 %v249
    %296 = vmatpush1.msra.mxu0 %v248
    %297 = vmatprep.subr.mxu0 %v247
    %298 = vmatpush1.msra.mxu0 %v246
    %299 = vmatprep.subr.mxu0 0.0
    %300 = vmatpush2.msra.mxu0 0.0
    %301 = vmatprep.subr.mxu0 0.0
    %302 = vmatpush2.msra.mxu0 0.0
    %303 = vmatprep.subr.mxu0 0.0
    %304 = vmatpush2.msra.mxu0 0.0
    %305 = vmatprep.subr.mxu0 0.0
    %306 = vmatpush2.msra.mxu0 0.0
    %307 = vmatprep.subr.mxu0 0.0
    %308 = vmatpush2.msra.mxu0 0.0
    %309 = vmatprep.subr.mxu0 0.0
    %310 = vmatpush2.msra.mxu0 0.0
    %311 = vmatprep.subr.mxu0 0.0
    %312 = vmatpush2.msra.mxu0 0.0
    %313 = vmatprep.subr.mxu0 0.0
    %314 = vmatpush2.msra.mxu0 0.0
    %315 = vmatprep.subr.mxu0 0.0
    %316 = vmatpush2.msra.mxu0 0.0
    %317 = vmatprep.subr.mxu0 0.0
    %318 = vmatpush2.msra.mxu0 0.0
    %319 = vmatprep.subr.mxu0 0.0
    %320 = vmatpush2.msra.mxu0 0.0
    %321 = vmatprep.subr.mxu0 0.0
    %322 = vmatpush2.msra.mxu0 0.0
    %323 = vmatprep.subr.mxu0 0.0
    %324 = vmatpush2.msra.mxu0 0.0
    %325 = vmatprep.subr.mxu0 0.0
    %326 = vmatpush2.msra.mxu0 0.0
    %327 = vmatprep.subr.mxu0 0.0
    %328 = vmatpush2.msra.mxu0 0.0
    %329 = vmatprep.subr.mxu0 0.0
    %330 = vmatpush2.msra.mxu0 0.0
    %331 = vmatprep.mubr.f32.mxu0 0.0
    %332 = vmatmul.mubr.f32.gmra.mxu0 %v265
    %v333 = vpop.f32.mrf.mxu0
    %v334 = vadd.f32 0.0, %v333
    %v335 = vpop.f32.mrf.mxu0
    %v336 = vadd.f32 0.0, %v335
    %337 = vdwg.mxu0
    %v340 = vcombine.low %v334, %v336
    %v342 = vunpack.c.l.s4 1983009808
    %v343 = vunpack.c.0.s8 %v342
    %v344 = vlaneseq
    %v345 = vshrl.u32 %v344, 7
    %v346 = vsub.s32 %v343, %v345
    %v347 = vrot.slane %v340, %v346
    %v349 = vadd.f32 %v262, %v347
    %v350 = vxor.u32 %v349, 2147483648
    %v351 = vmul.f32 %v350, 1.442695
    %v352 = vpow.pop %v351
    %v353 = vadd.f32 %v352, 1.0
    %v354 = vrcp.pop %v353
    %v355 = vmul.f32 1.0, %v354
    %v357 = vrot.slane %v349, 2
    %v359 = vtanh.pop %v357
    %360 = vrot.lane.b32.xlu0 %v349, 64
    %v361 = vpop.permute.xlu0 %360
    %v362 = vrot.slane %v361, 2
    %v364 = vxor.u32 %v362, 2147483648
    %v365 = vmul.f32 %v364, 1.442695
    %v366 = vpow.pop %v365
    %v367 = vadd.f32 %v366, 1.0
    %v368 = vrcp.pop %v367
    %v369 = vmul.f32 1.0, %v368
    %v370 = vmul.f32 %v355, 0.0
    %v371 = vmul.f32 %v355, %v359
    %373 = vrot.lane.b32.xlu0 %v371, 64
    %v374 = vpop.permute.xlu0 %373
    %v376 = vadd.f32 %v370, %v374
    %v377 = vtanh.pop %v376
    %379 = vrot.lane.b32.xlu0 %v377, 64
    %v380 = vpop.permute.xlu0 %379
    %v382 = vmul.f32 %v369, %v380
    %vm383 = vcmask 254976
    %384 = vst.msk [vmem:[#allocation3] sm:$0x3] %vm383, %v382
    %v387 = vunpack.c.l.s4 1983009808
    %v388 = vunpack.c.0.s8 %v387
    %v389 = vlaneseq
    %v390 = vshrl.u32 %v389, 7
    %v391 = vsub.s32 %v388, %v390
    %v392 = vrot.slane %v382, %v391
    %393 = vrot.lane.b32.xlu0 %v392, 96
    %v394 = vpop.permute.xlu0 %393
    %s396 = scalar_lea.vmem [#allocation4], 14
    %397 = vst.msk [vmem:[%s396] sm:$0x3] %vm383, %v394
    %s398 = scalar_lea.vmem [#allocation2], 4
    %v399 = vld [vmem:[%s398] sm:$0xf]
    %v400 = vsel %vm263, %v382, 0
    %402 = vmatprep.subr.mxu0 0.0
    %403 = vmatpush1.msra.mxu0 0.0
    %404 = vmatprep.subr.mxu0 0.0
    %405 = vmatpush1.msra.mxu0 0.0
    %406 = vmatprep.subr.mxu0 0.0
    %407 = vmatpush1.msra.mxu0 0.0
    %408 = vmatprep.subr.mxu0 0.0
    %409 = vmatpush1.msra.mxu0 0.0
    %410 = vmatprep.subr.mxu0 0.0
    %411 = vmatpush1.msra.mxu0 0.0
    %412 = vmatprep.subr.mxu0 0.0
    %413 = vmatpush1.msra.mxu0 0.0
    %414 = vmatprep.subr.mxu0 0.0
    %415 = vmatpush1.msra.mxu0 0.0
    %416 = vmatprep.subr.mxu0 0.0
    %417 = vmatpush1.msra.mxu0 0.0
    %418 = vmatprep.subr.mxu0 %v261
    %419 = vmatpush1.msra.mxu0 %v260
    %420 = vmatprep.subr.mxu0 %v259
    %421 = vmatpush1.msra.mxu0 %v258
    %422 = vmatprep.subr.mxu0 %v257
    %423 = vmatpush1.msra.mxu0 %v256
    %424 = vmatprep.subr.mxu0 %v255
    %425 = vmatpush1.msra.mxu0 %v254
    %426 = vmatprep.subr.mxu0 %v253
    %427 = vmatpush1.msra.mxu0 %v252
    %428 = vmatprep.subr.mxu0 %v251
    %429 = vmatpush1.msra.mxu0 %v250
    %430 = vmatprep.subr.mxu0 %v249
    %431 = vmatpush1.msra.mxu0 %v248
    %432 = vmatprep.subr.mxu0 %v247
    %433 = vmatpush1.msra.mxu0 %v246
    %434 = vmatprep.subr.mxu0 0.0
    %435 = vmatpush2.msra.mxu0 0.0
    %436 = vmatprep.subr.mxu0 0.0
    %437 = vmatpush2.msra.mxu0 0.0
    %438 = vmatprep.subr.mxu0 0.0
    %439 = vmatpush2.msra.mxu0 0.0
    %440 = vmatprep.subr.mxu0 0.0
    %441 = vmatpush2.msra.mxu0 0.0
    %442 = vmatprep.subr.mxu0 0.0
    %443 = vmatpush2.msra.mxu0 0.0
    %444 = vmatprep.subr.mxu0 0.0
    %445 = vmatpush2.msra.mxu0 0.0
    %446 = vmatprep.subr.mxu0 0.0
    %447 = vmatpush2.msra.mxu0 0.0
    %448 = vmatprep.subr.mxu0 0.0
    %449 = vmatpush2.msra.mxu0 0.0
    %450 = vmatprep.subr.mxu0 0.0
    %451 = vmatpush2.msra.mxu0 0.0
    %452 = vmatprep.subr.mxu0 0.0
    %453 = vmatpush2.msra.mxu0 0.0
    %454 = vmatprep.subr.mxu0 0.0
    %455 = vmatpush2.msra.mxu0 0.0
    %456 = vmatprep.subr.mxu0 0.0
    %457 = vmatpush2.msra.mxu0 0.0
    %458 = vmatprep.subr.mxu0 0.0
    %459 = vmatpush2.msra.mxu0 0.0
    %460 = vmatprep.subr.mxu0 0.0
    %461 = vmatpush2.msra.mxu0 0.0
    %462 = vmatprep.subr.mxu0 0.0
    %463 = vmatpush2.msra.mxu0 0.0
    %464 = vmatprep.subr.mxu0 0.0
    %465 = vmatpush2.msra.mxu0 0.0
    %466 = vmatprep.mubr.f32.mxu0 0.0
    %467 = vmatmul.mubr.f32.gmra.mxu0 %v400
    %v468 = vpop.f32.mrf.mxu0
    %v469 = vadd.f32 0.0, %v468
    %v470 = vpop.f32.mrf.mxu0
    %v471 = vadd.f32 0.0, %v470
    %472 = vdwg.mxu0
    %v475 = vcombine.low %v469, %v471
    %v477 = vunpack.c.l.s4 1983009808
    %v478 = vunpack.c.0.s8 %v477
    %v479 = vlaneseq
    %v480 = vshrl.u32 %v479, 7
    %v481 = vsub.s32 %v478, %v480
    %v482 = vrot.slane %v475, %v481
    %v484 = vadd.f32 %v399, %v482
    %v485 = vxor.u32 %v484, 2147483648
    %v486 = vmul.f32 %v485, 1.442695
    %v487 = vpow.pop %v486
    %v488 = vadd.f32 %v487, 1.0
    %v489 = vrcp.pop %v488
    %v490 = vmul.f32 1.0, %v489
    %v492 = vrot.slane %v484, 2
    %v494 = vtanh.pop %v492
    %495 = vrot.lane.b32.xlu0 %v484, 64
    %v496 = vpop.permute.xlu0 %495
    %v497 = vrot.slane %v496, 2
    %v499 = vxor.u32 %v497, 2147483648
    %v500 = vmul.f32 %v499, 1.442695
    %v501 = vpow.pop %v500
    %v502 = vadd.f32 %v501, 1.0
    %v503 = vrcp.pop %v502
    %v504 = vmul.f32 1.0, %v503
    %v505 = vmul.f32 %v490, %v376
    %v506 = vmul.f32 %v490, %v494
    %508 = vrot.lane.b32.xlu0 %v506, 64
    %v509 = vpop.permute.xlu0 %508
    %v511 = vadd.f32 %v505, %v509
    %v512 = vtanh.pop %v511
    %514 = vrot.lane.b32.xlu0 %v512, 64
    %v515 = vpop.permute.xlu0 %514
    %v517 = vmul.f32 %v504, %v515
    %s518 = scalar_lea.vmem [#allocation3], 2
    %519 = vst.msk [vmem:[%s518] sm:$0x3] %vm383, %v517
    %v522 = vunpack.c.l.s4 1983009808
    %v523 = vunpack.c.0.s8 %v522
    %v524 = vlaneseq
    %v525 = vshrl.u32 %v524, 7
    %v526 = vsub.s32 %v523, %v525
    %v527 = vrot.slane %v517, %v526
    %528 = vrot.lane.b32.xlu0 %v527, 96
    %v529 = vpop.permute.xlu0 %528
    %s531 = scalar_lea.vmem [#allocation4], 12
    %532 = vst.msk [vmem:[%s531] sm:$0x3] %vm383, %v529
    %s533 = scalar_lea.vmem [#allocation2], 8
    %v534 = vld [vmem:[%s533] sm:$0xf]
    %v535 = vsel %vm263, %v517, 0
    %537 = vmatprep.subr.mxu0 0.0
    %538 = vmatpush1.msra.mxu0 0.0
    %539 = vmatprep.subr.mxu0 0.0
    %540 = vmatpush1.msra.mxu0 0.0
    %541 = vmatprep.subr.mxu0 0.0
    %542 = vmatpush1.msra.mxu0 0.0
    %543 = vmatprep.subr.mxu0 0.0
    %544 = vmatpush1.msra.mxu0 0.0
    %545 = vmatprep.subr.mxu0 0.0
    %546 = vmatpush1.msra.mxu0 0.0
    %547 = vmatprep.subr.mxu0 0.0
    %548 = vmatpush1.msra.mxu0 0.0
    %549 = vmatprep.subr.mxu0 0.0
    %550 = vmatpush1.msra.mxu0 0.0
    %551 = vmatprep.subr.mxu0 0.0
    %552 = vmatpush1.msra.mxu0 0.0
    %553 = vmatprep.subr.mxu0 %v261
    %554 = vmatpush1.msra.mxu0 %v260
    %555 = vmatprep.subr.mxu0 %v259
    %556 = vmatpush1.msra.mxu0 %v258
    %557 = vmatprep.subr.mxu0 %v257
    %558 = vmatpush1.msra.mxu0 %v256
    %559 = vmatprep.subr.mxu0 %v255
    %560 = vmatpush1.msra.mxu0 %v254
    %561 = vmatprep.subr.mxu0 %v253
    %562 = vmatpush1.msra.mxu0 %v252
    %563 = vmatprep.subr.mxu0 %v251
    %564 = vmatpush1.msra.mxu0 %v250
    %565 = vmatprep.subr.mxu0 %v249
    %566 = vmatpush1.msra.mxu0 %v248
    %567 = vmatprep.subr.mxu0 %v247
    %568 = vmatpush1.msra.mxu0 %v246
    %569 = vmatprep.subr.mxu0 0.0
    %570 = vmatpush2.msra.mxu0 0.0
    %571 = vmatprep.subr.mxu0 0.0
    %572 = vmatpush2.msra.mxu0 0.0
    %573 = vmatprep.subr.mxu0 0.0
    %574 = vmatpush2.msra.mxu0 0.0
    %575 = vmatprep.subr.mxu0 0.0
    %576 = vmatpush2.msra.mxu0 0.0
    %577 = vmatprep.subr.mxu0 0.0
    %578 = vmatpush2.msra.mxu0 0.0
    %579 = vmatprep.subr.mxu0 0.0
    %580 = vmatpush2.msra.mxu0 0.0
    %581 = vmatprep.subr.mxu0 0.0
    %582 = vmatpush2.msra.mxu0 0.0
    %583 = vmatprep.subr.mxu0 0.0
    %584 = vmatpush2.msra.mxu0 0.0
    %585 = vmatprep.subr.mxu0 0.0
    %586 = vmatpush2.msra.mxu0 0.0
    %587 = vmatprep.subr.mxu0 0.0
    %588 = vmatpush2.msra.mxu0 0.0
    %589 = vmatprep.subr.mxu0 0.0
    %590 = vmatpush2.msra.mxu0 0.0
    %591 = vmatprep.subr.mxu0 0.0
    %592 = vmatpush2.msra.mxu0 0.0
    %593 = vmatprep.subr.mxu0 0.0
    %594 = vmatpush2.msra.mxu0 0.0
    %595 = vmatprep.subr.mxu0 0.0
    %596 = vmatpush2.msra.mxu0 0.0
    %597 = vmatprep.subr.mxu0 0.0
    %598 = vmatpush2.msra.mxu0 0.0
    %599 = vmatprep.subr.mxu0 0.0
    %600 = vmatpush2.msra.mxu0 0.0
    %601 = vmatprep.mubr.f32.mxu0 0.0
    %602 = vmatmul.mubr.f32.gmra.mxu0 %v535
    %v603 = vpop.f32.mrf.mxu0
    %v604 = vadd.f32 0.0, %v603
    %v605 = vpop.f32.mrf.mxu0
    %v606 = vadd.f32 0.0, %v605
    %607 = vdwg.mxu0
    %v610 = vcombine.low %v604, %v606
    %v612 = vunpack.c.l.s4 1983009808
    %v613 = vunpack.c.0.s8 %v612
    %v614 = vlaneseq
    %v615 = vshrl.u32 %v614, 7
    %v616 = vsub.s32 %v613, %v615
    %v617 = vrot.slane %v610, %v616
    %v619 = vadd.f32 %v534, %v617
    %v620 = vxor.u32 %v619, 2147483648
    %v621 = vmul.f32 %v620, 1.442695
    %v622 = vpow.pop %v621
    %v623 = vadd.f32 %v622, 1.0
    %v624 = vrcp.pop %v623
    %v625 = vmul.f32 1.0, %v624
    %v627 = vrot.slane %v619, 2
    %v629 = vtanh.pop %v627
    %630 = vrot.lane.b32.xlu0 %v619, 64
    %v631 = vpop.permute.xlu0 %630
    %v632 = vrot.slane %v631, 2
    %v634 = vxor.u32 %v632, 2147483648
    %v635 = vmul.f32 %v634, 1.442695
    %v636 = vpow.pop %v635
    %v637 = vadd.f32 %v636, 1.0
    %v638 = vrcp.pop %v637
    %v639 = vmul.f32 1.0, %v638
    %v640 = vmul.f32 %v625, %v511
    %v641 = vmul.f32 %v625, %v629
    %643 = vrot.lane.b32.xlu0 %v641, 64
    %v644 = vpop.permute.xlu0 %643
    %v646 = vadd.f32 %v640, %v644
    %v647 = vtanh.pop %v646
    %649 = vrot.lane.b32.xlu0 %v647, 64
    %v650 = vpop.permute.xlu0 %649
    %v652 = vmul.f32 %v639, %v650
    %s653 = scalar_lea.vmem [#allocation3], 4
    %654 = vst.msk [vmem:[%s653] sm:$0x3] %vm383, %v652
    %v657 = vunpack.c.l.s4 1983009808
    %v658 = vunpack.c.0.s8 %v657
    %v659 = vlaneseq
    %v660 = vshrl.u32 %v659, 7
    %v661 = vsub.s32 %v658, %v660
    %v662 = vrot.slane %v652, %v661
    %663 = vrot.lane.b32.xlu0 %v662, 96
    %v664 = vpop.permute.xlu0 %663
    %s666 = scalar_lea.vmem [#allocation4], 10
    %667 = vst.msk [vmem:[%s666] sm:$0x3] %vm383, %v664
    %s668 = scalar_lea.vmem [#allocation2], 12
    %v669 = vld [vmem:[%s668] sm:$0xf]
    %v670 = vsel %vm263, %v652, 0
    %672 = vmatprep.subr.mxu0 0.0
    %673 = vmatpush1.msra.mxu0 0.0
    %674 = vmatprep.subr.mxu0 0.0
    %675 = vmatpush1.msra.mxu0 0.0
    %676 = vmatprep.subr.mxu0 0.0
    %677 = vmatpush1.msra.mxu0 0.0
    %678 = vmatprep.subr.mxu0 0.0
    %679 = vmatpush1.msra.mxu0 0.0
    %680 = vmatprep.subr.mxu0 0.0
    %681 = vmatpush1.msra.mxu0 0.0
    %682 = vmatprep.subr.mxu0 0.0
    %683 = vmatpush1.msra.mxu0 0.0
    %684 = vmatprep.subr.mxu0 0.0
    %685 = vmatpush1.msra.mxu0 0.0
    %686 = vmatprep.subr.mxu0 0.0
    %687 = vmatpush1.msra.mxu0 0.0
    %688 = vmatprep.subr.mxu0 %v261
    %689 = vmatpush1.msra.mxu0 %v260
    %690 = vmatprep.subr.mxu0 %v259
    %691 = vmatpush1.msra.mxu0 %v258
    %692 = vmatprep.subr.mxu0 %v257
    %693 = vmatpush1.msra.mxu0 %v256
    %694 = vmatprep.subr.mxu0 %v255
    %695 = vmatpush1.msra.mxu0 %v254
    %696 = vmatprep.subr.mxu0 %v253
    %697 = vmatpush1.msra.mxu0 %v252
    %698 = vmatprep.subr.mxu0 %v251
    %699 = vmatpush1.msra.mxu0 %v250
    %700 = vmatprep.subr.mxu0 %v249
    %701 = vmatpush1.msra.mxu0 %v248
    %702 = vmatprep.subr.mxu0 %v247
    %703 = vmatpush1.msra.mxu0 %v246
    %704 = vmatprep.subr.mxu0 0.0
    %705 = vmatpush2.msra.mxu0 0.0
    %706 = vmatprep.subr.mxu0 0.0
    %707 = vmatpush2.msra.mxu0 0.0
    %708 = vmatprep.subr.mxu0 0.0
    %709 = vmatpush2.msra.mxu0 0.0
    %710 = vmatprep.subr.mxu0 0.0
    %711 = vmatpush2.msra.mxu0 0.0
    %712 = vmatprep.subr.mxu0 0.0
    %713 = vmatpush2.msra.mxu0 0.0
    %714 = vmatprep.subr.mxu0 0.0
    %715 = vmatpush2.msra.mxu0 0.0
    %716 = vmatprep.subr.mxu0 0.0
    %717 = vmatpush2.msra.mxu0 0.0
    %718 = vmatprep.subr.mxu0 0.0
    %719 = vmatpush2.msra.mxu0 0.0
    %720 = vmatprep.subr.mxu0 0.0
    %721 = vmatpush2.msra.mxu0 0.0
    %722 = vmatprep.subr.mxu0 0.0
    %723 = vmatpush2.msra.mxu0 0.0
    %724 = vmatprep.subr.mxu0 0.0
    %725 = vmatpush2.msra.mxu0 0.0
    %726 = vmatprep.subr.mxu0 0.0
    %727 = vmatpush2.msra.mxu0 0.0
    %728 = vmatprep.subr.mxu0 0.0
    %729 = vmatpush2.msra.mxu0 0.0
    %730 = vmatprep.subr.mxu0 0.0
    %731 = vmatpush2.msra.mxu0 0.0
    %732 = vmatprep.subr.mxu0 0.0
    %733 = vmatpush2.msra.mxu0 0.0
    %734 = vmatprep.subr.mxu0 0.0
    %735 = vmatpush2.msra.mxu0 0.0
    %736 = vmatprep.mubr.f32.mxu0 0.0
    %737 = vmatmul.mubr.f32.gmra.mxu0 %v670
    %v738 = vpop.f32.mrf.mxu0
    %v739 = vadd.f32 0.0, %v738
    %v740 = vpop.f32.mrf.mxu0
    %v741 = vadd.f32 0.0, %v740
    %742 = vdwg.mxu0
    %v745 = vcombine.low %v739, %v741
    %v747 = vunpack.c.l.s4 1983009808
    %v748 = vunpack.c.0.s8 %v747
    %v749 = vlaneseq
    %v750 = vshrl.u32 %v749, 7
    %v751 = vsub.s32 %v748, %v750
    %v752 = vrot.slane %v745, %v751
    %v754 = vadd.f32 %v669, %v752
    %v755 = vxor.u32 %v754, 2147483648
    %v756 = vmul.f32 %v755, 1.442695
    %v757 = vpow.pop %v756
    %v758 = vadd.f32 %v757, 1.0
    %v759 = vrcp.pop %v758
    %v760 = vmul.f32 1.0, %v759
    %v762 = vrot.slane %v754, 2
    %v764 = vtanh.pop %v762
    %765 = vrot.lane.b32.xlu0 %v754, 64
    %v766 = vpop.permute.xlu0 %765
    %v767 = vrot.slane %v766, 2
    %v769 = vxor.u32 %v767, 2147483648
    %v770 = vmul.f32 %v769, 1.442695
    %v771 = vpow.pop %v770
    %v772 = vadd.f32 %v771, 1.0
    %v773 = vrcp.pop %v772
    %v774 = vmul.f32 1.0, %v773
    %v775 = vmul.f32 %v760, %v646
    %v776 = vmul.f32 %v760, %v764
    %778 = vrot.lane.b32.xlu0 %v776, 64
    %v779 = vpop.permute.xlu0 %778
    %v781 = vadd.f32 %v775, %v779
    %v782 = vtanh.pop %v781
    %784 = vrot.lane.b32.xlu0 %v782, 64
    %v785 = vpop.permute.xlu0 %784
    %v787 = vmul.f32 %v774, %v785
    %s788 = scalar_lea.vmem [#allocation3], 6
    %789 = vst.msk [vmem:[%s788] sm:$0x3] %vm383, %v787
    %v792 = vunpack.c.l.s4 1983009808
    %v793 = vunpack.c.0.s8 %v792
    %v794 = vlaneseq
    %v795 = vshrl.u32 %v794, 7
    %v796 = vsub.s32 %v793, %v795
    %v797 = vrot.slane %v787, %v796
    %798 = vrot.lane.b32.xlu0 %v797, 96
    %v799 = vpop.permute.xlu0 %798
    %s801 = scalar_lea.vmem [#allocation4], 8
    %802 = vst.msk [vmem:[%s801] sm:$0x3] %vm383, %v799
    %s803 = scalar_lea.vmem [#allocation2], 16
    %v804 = vld [vmem:[%s803] sm:$0xf]
    %v805 = vsel %vm263, %v787, 0
    %807 = vmatprep.subr.mxu0 0.0
    %808 = vmatpush1.msra.mxu0 0.0
    %809 = vmatprep.subr.mxu0 0.0
    %810 = vmatpush1.msra.mxu0 0.0
    %811 = vmatprep.subr.mxu0 0.0
    %812 = vmatpush1.msra.mxu0 0.0
    %813 = vmatprep.subr.mxu0 0.0
    %814 = vmatpush1.msra.mxu0 0.0
    %815 = vmatprep.subr.mxu0 0.0
    %816 = vmatpush1.msra.mxu0 0.0
    %817 = vmatprep.subr.mxu0 0.0
    %818 = vmatpush1.msra.mxu0 0.0
    %819 = vmatprep.subr.mxu0 0.0
    %820 = vmatpush1.msra.mxu0 0.0
    %821 = vmatprep.subr.mxu0 0.0
    %822 = vmatpush1.msra.mxu0 0.0
    %823 = vmatprep.subr.mxu0 %v261
    %824 = vmatpush1.msra.mxu0 %v260
    %825 = vmatprep.subr.mxu0 %v259
    %826 = vmatpush1.msra.mxu0 %v258
    %827 = vmatprep.subr.mxu0 %v257
    %828 = vmatpush1.msra.mxu0 %v256
    %829 = vmatprep.subr.mxu0 %v255
    %830 = vmatpush1.msra.mxu0 %v254
    %831 = vmatprep.subr.mxu0 %v253
    %832 = vmatpush1.msra.mxu0 %v252
    %833 = vmatprep.subr.mxu0 %v251
    %834 = vmatpush1.msra.mxu0 %v250
    %835 = vmatprep.subr.mxu0 %v249
    %836 = vmatpush1.msra.mxu0 %v248
    %837 = vmatprep.subr.mxu0 %v247
    %838 = vmatpush1.msra.mxu0 %v246
    %839 = vmatprep.subr.mxu0 0.0
    %840 = vmatpush2.msra.mxu0 0.0
    %841 = vmatprep.subr.mxu0 0.0
    %842 = vmatpush2.msra.mxu0 0.0
    %843 = vmatprep.subr.mxu0 0.0
    %844 = vmatpush2.msra.mxu0 0.0
    %845 = vmatprep.subr.mxu0 0.0
    %846 = vmatpush2.msra.mxu0 0.0
    %847 = vmatprep.subr.mxu0 0.0
    %848 = vmatpush2.msra.mxu0 0.0
    %849 = vmatprep.subr.mxu0 0.0
    %850 = vmatpush2.msra.mxu0 0.0
    %851 = vmatprep.subr.mxu0 0.0
    %852 = vmatpush2.msra.mxu0 0.0
    %853 = vmatprep.subr.mxu0 0.0
    %854 = vmatpush2.msra.mxu0 0.0
    %855 = vmatprep.subr.mxu0 0.0
    %856 = vmatpush2.msra.mxu0 0.0
    %857 = vmatprep.subr.mxu0 0.0
    %858 = vmatpush2.msra.mxu0 0.0
    %859 = vmatprep.subr.mxu0 0.0
    %860 = vmatpush2.msra.mxu0 0.0
    %861 = vmatprep.subr.mxu0 0.0
    %862 = vmatpush2.msra.mxu0 0.0
    %863 = vmatprep.subr.mxu0 0.0
    %864 = vmatpush2.msra.mxu0 0.0
    %865 = vmatprep.subr.mxu0 0.0
    %866 = vmatpush2.msra.mxu0 0.0
    %867 = vmatprep.subr.mxu0 0.0
    %868 = vmatpush2.msra.mxu0 0.0
    %869 = vmatprep.subr.mxu0 0.0
    %870 = vmatpush2.msra.mxu0 0.0
    %871 = vmatprep.mubr.f32.mxu0 0.0
    %872 = vmatmul.mubr.f32.gmra.mxu0 %v805
    %v873 = vpop.f32.mrf.mxu0
    %v874 = vadd.f32 0.0, %v873
    %v875 = vpop.f32.mrf.mxu0
    %v876 = vadd.f32 0.0, %v875
    %877 = vdwg.mxu0
    %v880 = vcombine.low %v874, %v876
    %v882 = vunpack.c.l.s4 1983009808
    %v883 = vunpack.c.0.s8 %v882
    %v884 = vlaneseq
    %v885 = vshrl.u32 %v884, 7
    %v886 = vsub.s32 %v883, %v885
    %v887 = vrot.slane %v880, %v886
    %v889 = vadd.f32 %v804, %v887
    %v890 = vxor.u32 %v889, 2147483648
    %v891 = vmul.f32 %v890, 1.442695
    %v892 = vpow.pop %v891
    %v893 = vadd.f32 %v892, 1.0
    %v894 = vrcp.pop %v893
    %v895 = vmul.f32 1.0, %v894
    %v897 = vrot.slane %v889, 2
    %v899 = vtanh.pop %v897
    %900 = vrot.lane.b32.xlu0 %v889, 64
    %v901 = vpop.permute.xlu0 %900
    %v902 = vrot.slane %v901, 2
    %v904 = vxor.u32 %v902, 2147483648
    %v905 = vmul.f32 %v904, 1.442695
    %v906 = vpow.pop %v905
    %v907 = vadd.f32 %v906, 1.0
    %v908 = vrcp.pop %v907
    %v909 = vmul.f32 1.0, %v908
    %v910 = vmul.f32 %v895, %v781
    %v911 = vmul.f32 %v895, %v899
    %913 = vrot.lane.b32.xlu0 %v911, 64
    %v914 = vpop.permute.xlu0 %913
    %v916 = vadd.f32 %v910, %v914
    %v917 = vtanh.pop %v916
    %919 = vrot.lane.b32.xlu0 %v917, 64
    %v920 = vpop.permute.xlu0 %919
    %v922 = vmul.f32 %v909, %v920
    %s923 = scalar_lea.vmem [#allocation3], 8
    %924 = vst.msk [vmem:[%s923] sm:$0x3] %vm383, %v922
    %v927 = vunpack.c.l.s4 1983009808
    %v928 = vunpack.c.0.s8 %v927
    %v929 = vlaneseq
    %v930 = vshrl.u32 %v929, 7
    %v931 = vsub.s32 %v928, %v930
    %v932 = vrot.slane %v922, %v931
    %933 = vrot.lane.b32.xlu0 %v932, 96
    %v934 = vpop.permute.xlu0 %933
    %s936 = scalar_lea.vmem [#allocation4], 6
    %937 = vst.msk [vmem:[%s936] sm:$0x3] %vm383, %v934
    %s938 = scalar_lea.vmem [#allocation2], 20
    %v939 = vld [vmem:[%s938] sm:$0xf]
    %v940 = vsel %vm263, %v922, 0
    %942 = vmatprep.subr.mxu0 0.0
    %943 = vmatpush1.msra.mxu0 0.0
    %944 = vmatprep.subr.mxu0 0.0
    %945 = vmatpush1.msra.mxu0 0.0
    %946 = vmatprep.subr.mxu0 0.0
    %947 = vmatpush1.msra.mxu0 0.0
    %948 = vmatprep.subr.mxu0 0.0
    %949 = vmatpush1.msra.mxu0 0.0
    %950 = vmatprep.subr.mxu0 0.0
    %951 = vmatpush1.msra.mxu0 0.0
    %952 = vmatprep.subr.mxu0 0.0
    %953 = vmatpush1.msra.mxu0 0.0
    %954 = vmatprep.subr.mxu0 0.0
    %955 = vmatpush1.msra.mxu0 0.0
    %956 = vmatprep.subr.mxu0 0.0
    %957 = vmatpush1.msra.mxu0 0.0
    %958 = vmatprep.subr.mxu0 %v261
    %959 = vmatpush1.msra.mxu0 %v260
    %960 = vmatprep.subr.mxu0 %v259
    %961 = vmatpush1.msra.mxu0 %v258
    %962 = vmatprep.subr.mxu0 %v257
    %963 = vmatpush1.msra.mxu0 %v256
    %964 = vmatprep.subr.mxu0 %v255
    %965 = vmatpush1.msra.mxu0 %v254
    %966 = vmatprep.subr.mxu0 %v253
    %967 = vmatpush1.msra.mxu0 %v252
    %968 = vmatprep.subr.mxu0 %v251
    %969 = vmatpush1.msra.mxu0 %v250
    %970 = vmatprep.subr.mxu0 %v249
    %971 = vmatpush1.msra.mxu0 %v248
    %972 = vmatprep.subr.mxu0 %v247
    %973 = vmatpush1.msra.mxu0 %v246
    %974 = vmatprep.subr.mxu0 0.0
    %975 = vmatpush2.msra.mxu0 0.0
    %976 = vmatprep.subr.mxu0 0.0
    %977 = vmatpush2.msra.mxu0 0.0
    %978 = vmatprep.subr.mxu0 0.0
    %979 = vmatpush2.msra.mxu0 0.0
    %980 = vmatprep.subr.mxu0 0.0
    %981 = vmatpush2.msra.mxu0 0.0
    %982 = vmatprep.subr.mxu0 0.0
    %983 = vmatpush2.msra.mxu0 0.0
    %984 = vmatprep.subr.mxu0 0.0
    %985 = vmatpush2.msra.mxu0 0.0
    %986 = vmatprep.subr.mxu0 0.0
    %987 = vmatpush2.msra.mxu0 0.0
    %988 = vmatprep.subr.mxu0 0.0
    %989 = vmatpush2.msra.mxu0 0.0
    %990 = vmatprep.subr.mxu0 0.0
    %991 = vmatpush2.msra.mxu0 0.0
    %992 = vmatprep.subr.mxu0 0.0
    %993 = vmatpush2.msra.mxu0 0.0
    %994 = vmatprep.subr.mxu0 0.0
    %995 = vmatpush2.msra.mxu0 0.0
    %996 = vmatprep.subr.mxu0 0.0
    %997 = vmatpush2.msra.mxu0 0.0
    %998 = vmatprep.subr.mxu0 0.0
    %999 = vmatpush2.msra.mxu0 0.0
    %1000 = vmatprep.subr.mxu0 0.0
    %1001 = vmatpush2.msra.mxu0 0.0
    %1002 = vmatprep.subr.mxu0 0.0
    %1003 = vmatpush2.msra.mxu0 0.0
    %1004 = vmatprep.subr.mxu0 0.0
    %1005 = vmatpush2.msra.mxu0 0.0
    %1006 = vmatprep.mubr.f32.mxu0 0.0
    %1007 = vmatmul.mubr.f32.gmra.mxu0 %v940
    %v1008 = vpop.f32.mrf.mxu0
    %v1009 = vadd.f32 0.0, %v1008
    %v1010 = vpop.f32.mrf.mxu0
    %v1011 = vadd.f32 0.0, %v1010
    %1012 = vdwg.mxu0
    %v1015 = vcombine.low %v1009, %v1011
    %v1017 = vunpack.c.l.s4 1983009808
    %v1018 = vunpack.c.0.s8 %v1017
    %v1019 = vlaneseq
    %v1020 = vshrl.u32 %v1019, 7
    %v1021 = vsub.s32 %v1018, %v1020
    %v1022 = vrot.slane %v1015, %v1021
    %v1024 = vadd.f32 %v939, %v1022
    %v1025 = vxor.u32 %v1024, 2147483648
    %v1026 = vmul.f32 %v1025, 1.442695
    %v1027 = vpow.pop %v1026
    %v1028 = vadd.f32 %v1027, 1.0
    %v1029 = vrcp.pop %v1028
    %v1030 = vmul.f32 1.0, %v1029
    %v1032 = vrot.slane %v1024, 2
    %v1034 = vtanh.pop %v1032
    %1035 = vrot.lane.b32.xlu0 %v1024, 64
    %v1036 = vpop.permute.xlu0 %1035
    %v1037 = vrot.slane %v1036, 2
    %v1039 = vxor.u32 %v1037, 2147483648
    %v1040 = vmul.f32 %v1039, 1.442695
    %v1041 = vpow.pop %v1040
    %v1042 = vadd.f32 %v1041, 1.0
    %v1043 = vrcp.pop %v1042
    %v1044 = vmul.f32 1.0, %v1043
    %v1045 = vmul.f32 %v1030, %v916
    %v1046 = vmul.f32 %v1030, %v1034
    %1048 = vrot.lane.b32.xlu0 %v1046, 64
    %v1049 = vpop.permute.xlu0 %1048
    %v1051 = vadd.f32 %v1045, %v1049
    %v1052 = vtanh.pop %v1051
    %1054 = vrot.lane.b32.xlu0 %v1052, 64
    %v1055 = vpop.permute.xlu0 %1054
    %v1057 = vmul.f32 %v1044, %v1055
    %s1058 = scalar_lea.vmem [#allocation3], 10
    %1059 = vst.msk [vmem:[%s1058] sm:$0x3] %vm383, %v1057
    %v1062 = vunpack.c.l.s4 1983009808
    %v1063 = vunpack.c.0.s8 %v1062
    %v1064 = vlaneseq
    %v1065 = vshrl.u32 %v1064, 7
    %v1066 = vsub.s32 %v1063, %v1065
    %v1067 = vrot.slane %v1057, %v1066
    %1068 = vrot.lane.b32.xlu0 %v1067, 96
    %v1069 = vpop.permute.xlu0 %1068
    %s1071 = scalar_lea.vmem [#allocation4], 4
    %1072 = vst.msk [vmem:[%s1071] sm:$0x3] %vm383, %v1069
    %s1073 = scalar_lea.vmem [#allocation2], 24
    %v1074 = vld [vmem:[%s1073] sm:$0xf]
    %v1075 = vsel %vm263, %v1057, 0
    %1077 = vmatprep.subr.mxu0 0.0
    %1078 = vmatpush1.msra.mxu0 0.0
    %1079 = vmatprep.subr.mxu0 0.0
    %1080 = vmatpush1.msra.mxu0 0.0
    %1081 = vmatprep.subr.mxu0 0.0
    %1082 = vmatpush1.msra.mxu0 0.0
    %1083 = vmatprep.subr.mxu0 0.0
    %1084 = vmatpush1.msra.mxu0 0.0
    %1085 = vmatprep.subr.mxu0 0.0
    %1086 = vmatpush1.msra.mxu0 0.0
    %1087 = vmatprep.subr.mxu0 0.0
    %1088 = vmatpush1.msra.mxu0 0.0
    %1089 = vmatprep.subr.mxu0 0.0
    %1090 = vmatpush1.msra.mxu0 0.0
    %1091 = vmatprep.subr.mxu0 0.0
    %1092 = vmatpush1.msra.mxu0 0.0
    %1093 = vmatprep.subr.mxu0 %v261
    %1094 = vmatpush1.msra.mxu0 %v260
    %1095 = vmatprep.subr.mxu0 %v259
    %1096 = vmatpush1.msra.mxu0 %v258
    %1097 = vmatprep.subr.mxu0 %v257
    %1098 = vmatpush1.msra.mxu0 %v256
    %1099 = vmatprep.subr.mxu0 %v255
    %1100 = vmatpush1.msra.mxu0 %v254
    %1101 = vmatprep.subr.mxu0 %v253
    %1102 = vmatpush1.msra.mxu0 %v252
    %1103 = vmatprep.subr.mxu0 %v251
    %1104 = vmatpush1.msra.mxu0 %v250
    %1105 = vmatprep.subr.mxu0 %v249
    %1106 = vmatpush1.msra.mxu0 %v248
    %1107 = vmatprep.subr.mxu0 %v247
    %1108 = vmatpush1.msra.mxu0 %v246
    %1109 = vmatprep.subr.mxu0 0.0
    %1110 = vmatpush2.msra.mxu0 0.0
    %1111 = vmatprep.subr.mxu0 0.0
    %1112 = vmatpush2.msra.mxu0 0.0
    %1113 = vmatprep.subr.mxu0 0.0
    %1114 = vmatpush2.msra.mxu0 0.0
    %1115 = vmatprep.subr.mxu0 0.0
    %1116 = vmatpush2.msra.mxu0 0.0
    %1117 = vmatprep.subr.mxu0 0.0
    %1118 = vmatpush2.msra.mxu0 0.0
    %1119 = vmatprep.subr.mxu0 0.0
    %1120 = vmatpush2.msra.mxu0 0.0
    %1121 = vmatprep.subr.mxu0 0.0
    %1122 = vmatpush2.msra.mxu0 0.0
    %1123 = vmatprep.subr.mxu0 0.0
    %1124 = vmatpush2.msra.mxu0 0.0
    %1125 = vmatprep.subr.mxu0 0.0
    %1126 = vmatpush2.msra.mxu0 0.0
    %1127 = vmatprep.subr.mxu0 0.0
    %1128 = vmatpush2.msra.mxu0 0.0
    %1129 = vmatprep.subr.mxu0 0.0
    %1130 = vmatpush2.msra.mxu0 0.0
    %1131 = vmatprep.subr.mxu0 0.0
    %1132 = vmatpush2.msra.mxu0 0.0
    %1133 = vmatprep.subr.mxu0 0.0
    %1134 = vmatpush2.msra.mxu0 0.0
    %1135 = vmatprep.subr.mxu0 0.0
    %1136 = vmatpush2.msra.mxu0 0.0
    %1137 = vmatprep.subr.mxu0 0.0
    %1138 = vmatpush2.msra.mxu0 0.0
    %1139 = vmatprep.subr.mxu0 0.0
    %1140 = vmatpush2.msra.mxu0 0.0
    %1141 = vmatprep.mubr.f32.mxu0 0.0
    %1142 = vmatmul.mubr.f32.gmra.mxu0 %v1075
    %v1143 = vpop.f32.mrf.mxu0
    %v1144 = vadd.f32 0.0, %v1143
    %v1145 = vpop.f32.mrf.mxu0
    %v1146 = vadd.f32 0.0, %v1145
    %1147 = vdwg.mxu0
    %v1150 = vcombine.low %v1144, %v1146
    %v1152 = vunpack.c.l.s4 1983009808
    %v1153 = vunpack.c.0.s8 %v1152
    %v1154 = vlaneseq
    %v1155 = vshrl.u32 %v1154, 7
    %v1156 = vsub.s32 %v1153, %v1155
    %v1157 = vrot.slane %v1150, %v1156
    %v1159 = vadd.f32 %v1074, %v1157
    %v1160 = vxor.u32 %v1159, 2147483648
    %v1161 = vmul.f32 %v1160, 1.442695
    %v1162 = vpow.pop %v1161
    %v1163 = vadd.f32 %v1162, 1.0
    %v1164 = vrcp.pop %v1163
    %v1165 = vmul.f32 1.0, %v1164
    %v1167 = vrot.slane %v1159, 2
    %v1169 = vtanh.pop %v1167
    %1170 = vrot.lane.b32.xlu0 %v1159, 64
    %v1171 = vpop.permute.xlu0 %1170
    %v1172 = vrot.slane %v1171, 2
    %v1174 = vxor.u32 %v1172, 2147483648
    %v1175 = vmul.f32 %v1174, 1.442695
    %v1176 = vpow.pop %v1175
    %v1177 = vadd.f32 %v1176, 1.0
    %v1178 = vrcp.pop %v1177
    %v1179 = vmul.f32 1.0, %v1178
    %v1180 = vmul.f32 %v1165, %v1051
    %v1181 = vmul.f32 %v1165, %v1169
    %1183 = vrot.lane.b32.xlu0 %v1181, 64
    %v1184 = vpop.permute.xlu0 %1183
    %v1186 = vadd.f32 %v1180, %v1184
    %v1187 = vtanh.pop %v1186
    %1189 = vrot.lane.b32.xlu0 %v1187, 64
    %v1190 = vpop.permute.xlu0 %1189
    %v1192 = vmul.f32 %v1179, %v1190
    %s1193 = scalar_lea.vmem [#allocation3], 12
    %1194 = vst.msk [vmem:[%s1193] sm:$0x3] %vm383, %v1192
    %v1197 = vunpack.c.l.s4 1983009808
    %v1198 = vunpack.c.0.s8 %v1197
    %v1199 = vlaneseq
    %v1200 = vshrl.u32 %v1199, 7
    %v1201 = vsub.s32 %v1198, %v1200
    %v1202 = vrot.slane %v1192, %v1201
    %1203 = vrot.lane.b32.xlu0 %v1202, 96
    %v1204 = vpop.permute.xlu0 %1203
    %s1206 = scalar_lea.vmem [#allocation4], 2
    %1207 = vst.msk [vmem:[%s1206] sm:$0x3] %vm383, %v1204
    %s1208 = scalar_lea.vmem [#allocation2], 28
    %v1209 = vld [vmem:[%s1208] sm:$0xf]
    %v1210 = vsel %vm263, %v1192, 0
    %1212 = vmatprep.subr.mxu0 0.0
    %1213 = vmatpush1.msra.mxu0 0.0
    %1214 = vmatprep.subr.mxu0 0.0
    %1215 = vmatpush1.msra.mxu0 0.0
    %1216 = vmatprep.subr.mxu0 0.0
    %1217 = vmatpush1.msra.mxu0 0.0
    %1218 = vmatprep.subr.mxu0 0.0
    %1219 = vmatpush1.msra.mxu0 0.0
    %1220 = vmatprep.subr.mxu0 0.0
    %1221 = vmatpush1.msra.mxu0 0.0
    %1222 = vmatprep.subr.mxu0 0.0
    %1223 = vmatpush1.msra.mxu0 0.0
    %1224 = vmatprep.subr.mxu0 0.0
    %1225 = vmatpush1.msra.mxu0 0.0
    %1226 = vmatprep.subr.mxu0 0.0
    %1227 = vmatpush1.msra.mxu0 0.0
    %1228 = vmatprep.subr.mxu0 %v261
    %1229 = vmatpush1.msra.mxu0 %v260
    %1230 = vmatprep.subr.mxu0 %v259
    %1231 = vmatpush1.msra.mxu0 %v258
    %1232 = vmatprep.subr.mxu0 %v257
    %1233 = vmatpush1.msra.mxu0 %v256
    %1234 = vmatprep.subr.mxu0 %v255
    %1235 = vmatpush1.msra.mxu0 %v254
    %1236 = vmatprep.subr.mxu0 %v253
    %1237 = vmatpush1.msra.mxu0 %v252
    %1238 = vmatprep.subr.mxu0 %v251
    %1239 = vmatpush1.msra.mxu0 %v250
    %1240 = vmatprep.subr.mxu0 %v249
    %1241 = vmatpush1.msra.mxu0 %v248
    %1242 = vmatprep.subr.mxu0 %v247
    %1243 = vmatpush1.msra.mxu0 %v246
    %1244 = vmatprep.subr.mxu0 0.0
    %1245 = vmatpush2.msra.mxu0 0.0
    %1246 = vmatprep.subr.mxu0 0.0
    %1247 = vmatpush2.msra.mxu0 0.0
    %1248 = vmatprep.subr.mxu0 0.0
    %1249 = vmatpush2.msra.mxu0 0.0
    %1250 = vmatprep.subr.mxu0 0.0
    %1251 = vmatpush2.msra.mxu0 0.0
    %1252 = vmatprep.subr.mxu0 0.0
    %1253 = vmatpush2.msra.mxu0 0.0
    %1254 = vmatprep.subr.mxu0 0.0
    %1255 = vmatpush2.msra.mxu0 0.0
    %1256 = vmatprep.subr.mxu0 0.0
    %1257 = vmatpush2.msra.mxu0 0.0
    %1258 = vmatprep.subr.mxu0 0.0
    %1259 = vmatpush2.msra.mxu0 0.0
    %1260 = vmatprep.subr.mxu0 0.0
    %1261 = vmatpush2.msra.mxu0 0.0
    %1262 = vmatprep.subr.mxu0 0.0
    %1263 = vmatpush2.msra.mxu0 0.0
    %1264 = vmatprep.subr.mxu0 0.0
    %1265 = vmatpush2.msra.mxu0 0.0
    %1266 = vmatprep.subr.mxu0 0.0
    %1267 = vmatpush2.msra.mxu0 0.0
    %1268 = vmatprep.subr.mxu0 0.0
    %1269 = vmatpush2.msra.mxu0 0.0
    %1270 = vmatprep.subr.mxu0 0.0
    %1271 = vmatpush2.msra.mxu0 0.0
    %1272 = vmatprep.subr.mxu0 0.0
    %1273 = vmatpush2.msra.mxu0 0.0
    %1274 = vmatprep.subr.mxu0 0.0
    %1275 = vmatpush2.msra.mxu0 0.0
    %1276 = vmatprep.mubr.f32.mxu0 0.0
    %1277 = vmatmul.mubr.f32.gmra.mxu0 %v1210
    %v1278 = vpop.f32.mrf.mxu0
    %v1279 = vadd.f32 0.0, %v1278
    %v1280 = vpop.f32.mrf.mxu0
    %v1281 = vadd.f32 0.0, %v1280
    %1282 = vdwg.mxu0
    %v1285 = vcombine.low %v1279, %v1281
    %v1287 = vunpack.c.l.s4 1983009808
    %v1288 = vunpack.c.0.s8 %v1287
    %v1289 = vlaneseq
    %v1290 = vshrl.u32 %v1289, 7
    %v1291 = vsub.s32 %v1288, %v1290
    %v1292 = vrot.slane %v1285, %v1291
    %v1294 = vadd.f32 %v1209, %v1292
    %v1295 = vxor.u32 %v1294, 2147483648
    %v1296 = vmul.f32 %v1295, 1.442695
    %v1297 = vpow.pop %v1296
    %v1298 = vadd.f32 %v1297, 1.0
    %v1299 = vrcp.pop %v1298
    %v1300 = vmul.f32 1.0, %v1299
    %v1302 = vrot.slane %v1294, 2
    %v1304 = vtanh.pop %v1302
    %1305 = vrot.lane.b32.xlu0 %v1294, 64
    %v1306 = vpop.permute.xlu0 %1305
    %v1307 = vrot.slane %v1306, 2
    %v1309 = vxor.u32 %v1307, 2147483648
    %v1310 = vmul.f32 %v1309, 1.442695
    %v1311 = vpow.pop %v1310
    %v1312 = vadd.f32 %v1311, 1.0
    %v1313 = vrcp.pop %v1312
    %v1314 = vmul.f32 1.0, %v1313
    %v1315 = vmul.f32 %v1300, %v1186
    %v1316 = vmul.f32 %v1300, %v1304
    %1318 = vrot.lane.b32.xlu0 %v1316, 64
    %v1319 = vpop.permute.xlu0 %1318
    %v1321 = vadd.f32 %v1315, %v1319
    %v1322 = vtanh.pop %v1321
    %1324 = vrot.lane.b32.xlu0 %v1322, 64
    %v1325 = vpop.permute.xlu0 %1324
    %v1327 = vmul.f32 %v1314, %v1325
    %s1328 = scalar_lea.vmem [#allocation3], 14
    %1329 = vst.msk [vmem:[%s1328] sm:$0x3] %vm383, %v1327
    %v1332 = vunpack.c.l.s4 1983009808
    %v1333 = vunpack.c.0.s8 %v1332
    %v1334 = vlaneseq
    %v1335 = vshrl.u32 %v1334, 7
    %v1336 = vsub.s32 %v1333, %v1335
    %v1337 = vrot.slane %v1327, %v1336
    %1338 = vrot.lane.b32.xlu0 %v1337, 96
    %v1339 = vpop.permute.xlu0 %1338
    %1341 = vst.msk [vmem:[#allocation4] sm:$0x3] %vm383, %v1339
    %v1342 = vld [vmem:[#allocation3] sm:$0x3]
    %v1343 = vld [vmem:[#allocation3 + $0x2] sm:$0x3]
    %v1344 = vld [vmem:[#allocation3 + $0x4] sm:$0x3]
    %v1345 = vld [vmem:[#allocation3 + $0x6] sm:$0x3]
    %v1346 = vld [vmem:[#allocation3 + $0x8] sm:$0x3]
    %v1347 = vld [vmem:[#allocation3 + $0xa] sm:$0x3]
    %v1348 = vld [vmem:[#allocation3 + $0xc] sm:$0x3]
    %v1349 = vld [vmem:[#allocation3 + $0xe] sm:$0x3]
    %v1350 = vld [vmem:[#allocation4] sm:$0x3]
    %v1351 = vld [vmem:[#allocation4 + $0x2] sm:$0x3]
    %v1352 = vld [vmem:[#allocation4 + $0x4] sm:$0x3]
    %v1353 = vld [vmem:[#allocation4 + $0x6] sm:$0x3]
    %v1354 = vld [vmem:[#allocation4 + $0x8] sm:$0x3]
    %v1355 = vld [vmem:[#allocation4 + $0xa] sm:$0x3]
    %v1356 = vld [vmem:[#allocation4 + $0xc] sm:$0x3]
    %v1357 = vld [vmem:[#allocation4 + $0xe] sm:$0x3]
    %1366 = vrot.lane.b32.xlu0 %v1350, 32
    %v1367 = vpop.permute.xlu0 %1366
    %1368 = vrot.lane.b32.xlu0 %v1351, 32
    %v1369 = vpop.permute.xlu0 %1368
    %1370 = vrot.lane.b32.xlu0 %v1352, 32
    %v1371 = vpop.permute.xlu0 %1370
    %1372 = vrot.lane.b32.xlu0 %v1353, 32
    %v1373 = vpop.permute.xlu0 %1372
    %1374 = vrot.lane.b32.xlu0 %v1354, 32
    %v1375 = vpop.permute.xlu0 %1374
    %1376 = vrot.lane.b32.xlu0 %v1355, 32
    %v1377 = vpop.permute.xlu0 %1376
    %1378 = vrot.lane.b32.xlu0 %v1356, 32
    %v1379 = vpop.permute.xlu0 %1378
    %1380 = vrot.lane.b32.xlu0 %v1357, 32
    %v1381 = vpop.permute.xlu0 %1380
    %v1390 = vsel %vm108, %v1342, %v1367
    %v1391 = vsel %vm108, %v1343, %v1369
    %v1392 = vsel %vm108, %v1344, %v1371
    %v1393 = vsel %vm108, %v1345, %v1373
    %v1394 = vsel %vm108, %v1346, %v1375
    %v1395 = vsel %vm108, %v1347, %v1377
    %v1396 = vsel %vm108, %v1348, %v1379
    %v1397 = vsel %vm108, %v1349, %v1381
    %v1398 = vld [vmem:[%s4] sm:$0xff]
    %v1399 = vld [vmem:[%s4 + $0x8] sm:$0xff]
    %v1400 = vld [vmem:[%s4 + $0x10] sm:$0xff]
    %v1401 = vld [vmem:[%s4 + $0x18] sm:$0xff]
    %v1402 = vld [vmem:[%s4 + $0x20] sm:$0xff]
    %v1403 = vld [vmem:[%s4 + $0x28] sm:$0xff]
    %v1404 = vld [vmem:[%s4 + $0x30] sm:$0xff]
    %v1405 = vld [vmem:[%s4 + $0x38] sm:$0xff]
    %v1406 = vld [vmem:[%s5] sm:$0x1]
    %v1408 = vlaneseq
    %v1409 = vshrl.u32 %v1408, 7
    %v1410 = vsub.s32 0, %v1409
    %v1411 = vrot.slane %v1406, %v1410
    %v1421 = vcombine.low %v1390, %v1391
    %v1422 = vcombine.low %v1392, %v1393
    %v1424 = vunpack.c.l.s4 1983009808
    %v1425 = vunpack.c.0.s8 %v1424
    %v1426 = vlaneseq
    %v1427 = vshrl.u32 %v1426, 7
    %v1428 = vsub.s32 %v1425, %v1427
    %v1429 = vrot.slane %v1421, %v1428
    %v1431 = vunpack.c.l.s4 1983009808
    %v1432 = vunpack.c.0.s8 %v1431
    %v1433 = vlaneseq
    %v1434 = vshrl.u32 %v1433, 7
    %v1435 = vsub.s32 %v1432, %v1434
    %v1436 = vrot.slane %v1422, %v1435
    %v1437 = vcombine.low %v1429, %v1436
    %v1438 = vcombine.low %v1394, %v1395
    %v1439 = vcombine.low %v1396, %v1397
    %v1441 = vunpack.c.l.s4 1983009808
    %v1442 = vunpack.c.0.s8 %v1441
    %v1443 = vlaneseq
    %v1444 = vshrl.u32 %v1443, 7
    %v1445 = vsub.s32 %v1442, %v1444
    %v1446 = vrot.slane %v1438, %v1445
    %v1448 = vunpack.c.l.s4 1983009808
    %v1449 = vunpack.c.0.s8 %v1448
    %v1450 = vlaneseq
    %v1451 = vshrl.u32 %v1450, 7
    %v1452 = vsub.s32 %v1449, %v1451
    %v1453 = vrot.slane %v1439, %v1452
    %v1454 = vcombine.low %v1446, %v1453
    %v1455 = vsel %vm263, %v1437, 0
    %v1457 = vsel %vm263, %v1454, 0
    %1459 = vmatprep.subr.mxu0 0.0
    %1460 = vmatpush1.msra.mxu0 0.0
    %1461 = vmatprep.subr.mxu0 0.0
    %1462 = vmatpush1.msra.mxu0 0.0
    %1463 = vmatprep.subr.mxu0 0.0
    %1464 = vmatpush1.msra.mxu0 0.0
    %1465 = vmatprep.subr.mxu0 0.0
    %1466 = vmatpush1.msra.mxu0 0.0
    %1467 = vmatprep.subr.mxu0 0.0
    %1468 = vmatpush1.msra.mxu0 0.0
    %1469 = vmatprep.subr.mxu0 0.0
    %1470 = vmatpush1.msra.mxu0 0.0
    %1471 = vmatprep.subr.mxu0 0.0
    %1472 = vmatpush1.msra.mxu0 0.0
    %1473 = vmatprep.subr.mxu0 0.0
    %1474 = vmatpush1.msra.mxu0 0.0
    %1475 = vmatprep.subr.mxu0 0.0
    %1476 = vmatpush1.msra.mxu0 %v1405
    %1477 = vmatprep.subr.mxu0 0.0
    %1478 = vmatpush1.msra.mxu0 %v1404
    %1479 = vmatprep.subr.mxu0 0.0
    %1480 = vmatpush1.msra.mxu0 %v1403
    %1481 = vmatprep.subr.mxu0 0.0
    %1482 = vmatpush1.msra.mxu0 %v1402
    %1483 = vmatprep.subr.mxu0 0.0
    %1484 = vmatpush1.msra.mxu0 %v1401
    %1485 = vmatprep.subr.mxu0 0.0
    %1486 = vmatpush1.msra.mxu0 %v1400
    %1487 = vmatprep.subr.mxu0 0.0
    %1488 = vmatpush1.msra.mxu0 %v1399
    %1489 = vmatprep.subr.mxu0 0.0
    %1490 = vmatpush1.msra.mxu0 %v1398
    %1491 = vmatprep.subr.mxu0 0.0
    %1492 = vmatpush2.msra.mxu0 0.0
    %1493 = vmatprep.subr.mxu0 0.0
    %1494 = vmatpush2.msra.mxu0 0.0
    %1495 = vmatprep.subr.mxu0 0.0
    %1496 = vmatpush2.msra.mxu0 0.0
    %1497 = vmatprep.subr.mxu0 0.0
    %1498 = vmatpush2.msra.mxu0 0.0
    %1499 = vmatprep.subr.mxu0 0.0
    %1500 = vmatpush2.msra.mxu0 0.0
    %1501 = vmatprep.subr.mxu0 0.0
    %1502 = vmatpush2.msra.mxu0 0.0
    %1503 = vmatprep.subr.mxu0 0.0
    %1504 = vmatpush2.msra.mxu0 0.0
    %1505 = vmatprep.subr.mxu0 0.0
    %1506 = vmatpush2.msra.mxu0 0.0
    %1507 = vmatprep.subr.mxu0 0.0
    %1508 = vmatpush2.msra.mxu0 0.0
    %1509 = vmatprep.subr.mxu0 0.0
    %1510 = vmatpush2.msra.mxu0 0.0
    %1511 = vmatprep.subr.mxu0 0.0
    %1512 = vmatpush2.msra.mxu0 0.0
    %1513 = vmatprep.subr.mxu0 0.0
    %1514 = vmatpush2.msra.mxu0 0.0
    %1515 = vmatprep.subr.mxu0 0.0
    %1516 = vmatpush2.msra.mxu0 0.0
    %1517 = vmatprep.subr.mxu0 0.0
    %1518 = vmatpush2.msra.mxu0 0.0
    %1519 = vmatprep.subr.mxu0 0.0
    %1520 = vmatpush2.msra.mxu0 0.0
    %1521 = vmatprep.subr.mxu0 0.0
    %1522 = vmatpush2.msra.mxu0 0.0
    %1523 = vmatprep.mubr.f32.mxu0 0.0
    %1524 = vmatmul.mubr.f32.gmra.mxu0 %v1455
    %v1525 = vpop.f32.mrf.mxu0
    %v1526 = vadd.f32 %v1411, %v1525
    %v1527 = vpop.f32.mrf.mxu0
    %1528 = vmatprep.mubr.f32.mxu0 0.0
    %1529 = vmatmul.mubr.f32.gmra.mxu0 %v1457
    %v1530 = vpop.f32.mrf.mxu0
    %v1531 = vadd.f32 %v1411, %v1530
    %v1532 = vpop.f32.mrf.mxu0
    %1533 = vdwg.mxu0
    %v1536 = vcombine.high %v1526, %v1526
    %v1538 = vunpack.c.l.s4 1983009808
    %v1539 = vunpack.c.0.s8 %v1538
    %v1540 = vlaneseq
    %v1541 = vshrl.u32 %v1540, 7
    %v1542 = vsub.s32 %v1539, %v1541
    %v1543 = vrot.slane %v1526, %v1542
    %v1545 = vunpack.c.l.s4 1983009808
    %v1546 = vunpack.c.0.s8 %v1545
    %v1547 = vlaneseq
    %v1548 = vshrl.u32 %v1547, 7
    %v1549 = vsub.s32 %v1546, %v1548
    %v1550 = vrot.slane %v1536, %v1549
    %v1551 = vcombine.high %v1543, %v1543
    %v1552 = vcombine.high %v1550, %v1550
    %v1553 = vcombine.high %v1531, %v1531
    %v1555 = vunpack.c.l.s4 1983009808
    %v1556 = vunpack.c.0.s8 %v1555
    %v1557 = vlaneseq
    %v1558 = vshrl.u32 %v1557, 7
    %v1559 = vsub.s32 %v1556, %v1558
    %v1560 = vrot.slane %v1531, %v1559
    %v1562 = vunpack.c.l.s4 1983009808
    %v1563 = vunpack.c.0.s8 %v1562
    %v1564 = vlaneseq
    %v1565 = vshrl.u32 %v1564, 7
    %v1566 = vsub.s32 %v1563, %v1565
    %v1567 = vrot.slane %v1553, %v1566
    %v1568 = vcombine.high %v1560, %v1560
    %v1569 = vcombine.high %v1567, %v1567
    %vm1578 = vcmask 123904
    %1579 = vst.msk [vmem:[#allocation8] sm:$0x3] %vm1578, %v1543
    %1580 = vst.msk [vmem:[#allocation8 + $0x2] sm:$0x3] %vm1578, %v1551
    %1581 = vst.msk [vmem:[#allocation8 + $0x4] sm:$0x3] %vm1578, %v1550
    %1582 = vst.msk [vmem:[#allocation8 + $0x6] sm:$0x3] %vm1578, %v1552
    %1583 = vst.msk [vmem:[#allocation8 + $0x8] sm:$0x3] %vm1578, %v1560
    %1584 = vst.msk [vmem:[#allocation8 + $0xa] sm:$0x3] %vm1578, %v1568
    %1585 = vst.msk [vmem:[#allocation8 + $0xc] sm:$0x3] %vm1578, %v1567
    %1586 = vst.msk [vmem:[#allocation8 + $0xe] sm:$0x3] %vm1578, %v1569
    // Predicated region
    $region30: #{tpu_custom_call.1} parent=1 // pred_check
      _
    $region31: #{tpu_custom_call.1} parent=1 // pred_check_branch
      %1588 = sbr.rel (0) target = $region33
    $region32: #{tpu_custom_call.1} parent=1 // pred_region
      %s1590 = ssub.s32 256, 256
      %1591 = vsyncadd [#allocation7], %s1590
      %s1592 = sshll.u32 [#allocation8], 4
      %s1593 = int_to_ptr.vmem [resolvable:$true] %s1592
      %1598 = dma.vmem_to_hbm [thread:$0]  %s1593, 256, %s6, [#allocation7], 32, 32, 2
    $region33: #{tpu_custom_call.1} parent=1 // pred_fallthru
      _
    // Predicated region
    $region34: #{tpu_custom_call.1} parent=1 // pred_check
      _
    $region35: #{tpu_custom_call.1} parent=1 // pred_check_branch
      %1600 = sbr.rel (0) target = $region37
    $region36: #{tpu_custom_call.1} parent=1 // pred_region
      %1601 = dma.done [#allocation7], 256
    $region37: #{tpu_custom_call.1} parent=1 // pred_fallthru
      _
    %1602 = vsyncpa [#allocation6], 1
    %1603 = vsyncpa [#allocation7], 1

</llo_original>
